<compile_context>
chip_gen: v6e
topology: v6e:2x2x1
jax: 0.10.0
libtpu: 0.0.40
codegen_flags: <defaults>
</compile_context>

<pallas_src>
import jax
import jax.numpy as jnp
from jax.experimental import pallas as pl
from jax.experimental.pallas import tpu as pltpu

SINK_EPS = 0.01      # sinkhorn epsilon
CHARB_EPS = 1e-6     # Charbonnier epsilon (module's self.eps)

_VMEM_BUDGET_BYTES = 24 * 1024 * 1024   # conservative working-set budget
_VMEM_LIMIT_BYTES = 48 * 1024 * 1024    # fits v7x's 64 MiB VMEM with headroom


def _sinkhorn_cost_kernel(x_ref, y_ref, out_ref):
    x = x_ref[...]            # (B, H, W) float32
    y = y_ref[...]            # (B, H, W) float32
    B, H, _ = x.shape

    # --- cost matrix on the MXU: C = ||x||^2 + ||y||^2 - 2 x y^T -----------
    xy = jnp.einsum("biw,bjw->bij", x, y,
                    preferred_element_type=jnp.float32)      # (B, H, H)
    xn = jnp.sum(x * x, axis=-1, keepdims=True)              # (B, H, 1)
    yn = jnp.sum(y * y, axis=-1, keepdims=True)              # (B, H, 1)
    C = xn + jnp.swapaxes(yn, -1, -2) - 2.0 * xy              # (B, H, H)
    C = jnp.maximum(C, 0.0)   # guard tiny negatives from f32 cancellation

    inv_eps = 1.0 / SINK_EPS
    log_w = jnp.log(1.0 / H + 1e-8)      # log(mu + 1e-8), trace-time constant

    # --- one Sinkhorn sweep (PyTorch loop breaks after iteration 1) --------
    M0 = C * (-inv_eps)                                       # (B, H, H)

    # u-update (u = v = 0): logsumexp over j (lane axis)
    mx1 = jnp.max(M0, axis=-1, keepdims=True)                 # (B, H, 1)
    lse1 = jnp.log(jnp.sum(jnp.exp(M0 - mx1), axis=-1,
                           keepdims=True)) + mx1              # (B, H, 1)
    u_scaled = log_w - lse1                                   # u / eps

    # v-update (updated u, v = 0): logsumexp over i of Mt = M0 + u/eps
    Mt = M0 + u_scaled                                        # (B, H, H)
    mx2 = jnp.max(Mt, axis=-2, keepdims=True)                 # (B, 1, H)
    e2 = jnp.exp(Mt - mx2)                                    # (B, H, H)
    lse2 = jnp.log(jnp.sum(e2, axis=-2, keepdims=True)) + mx2 # (B, 1, H)
    v_scaled = log_w - lse2                                   # v / eps

    # pi = exp(Mt + v/eps) — reuse e2 so only a cheap (B, 1, H) exp remains.
    pi = e2 * jnp.exp(v_scaled + mx2)                         # (B, H, H)

    # transport cost per (batch, channel) pair
    pc = pi * C                                               # (B, H, H)
    cost = jnp.sum(jnp.sum(pc, axis=-1, keepdims=True), axis=-2)   # (B, 1)

    out_ref[...] = cost


@jax.jit
def l1_charbonnier_w_loss(x, y):
    """x, y: float32 [N, C, H, W]. Returns scalar loss (float32)."""
    assert x.shape == y.shape
    N, C, H, W = x.shape
    NC = N * C

    x2 = x.reshape(NC, H, W).astype(jnp.float32)
    y2 = y.reshape(NC, H, W).astype(jnp.float32)

    # Pick B_TILE from a VMEM budget: double-buffered input blocks plus
    # ~8 live (H, H) f32 temporaries (C, xy, M0, Mt, e2, pi, pc, slack).
    per_b = 2 * 2 * H * W * 4 + 8 * H * H * 4
    b_tile = max(1, _VMEM_BUDGET_BYTES // per_b)
    b_tile = int(min(b_tile, NC))
    b_tile = ((b_tile + 7) // 8) * 8          # sublane-aligned output block
    nc_pad = ((NC + b_tile - 1) // b_tile) * b_tile

    if nc_pad != NC:
        pad = nc_pad - NC
        x2 = jnp.pad(x2, ((0, pad), (0, 0), (0, 0)))
        y2 = jnp.pad(y2, ((0, pad), (0, 0), (0, 0)))

    cost = pl.pallas_call(
        _sinkhorn_cost_kernel,
        out_shape=jax.ShapeDtypeStruct((nc_pad, 1), jnp.float32),
        grid_spec=pltpu.PrefetchScalarGridSpec(
            num_scalar_prefetch=0,
            grid=(nc_pad // b_tile,),
            in_specs=[
                pl.BlockSpec((b_tile, H, W), lambda g: (g, 0, 0)),
                pl.BlockSpec((b_tile, H, W), lambda g: (g, 0, 0)),
            ],
            out_specs=pl.BlockSpec((b_tile, 1), lambda g: (g, 0)),
        ),
        compiler_params=pltpu.CompilerParams(
            dimension_semantics=("parallel",),
            vmem_limit_bytes=_VMEM_LIMIT_BYTES,
        ),
    )(x2, y2)

    # Charbonnier transform + final reduction in the wrapper (NC scalars only).
    cost = cost[:NC, 0]
    err = jnp.sqrt(cost * cost + CHARB_EPS)
    return jnp.sum(err)


def _reference_loss(x, y):
    """Pure-JAX reference mirroring the PyTorch forward (1 sinkhorn iter)."""
    N, C, H, W = x.shape
    costs = []
    for c in range(C):
        xc = x[:, c]                                     # (N, H, W)
        yc = y[:, c]
        Cm = jnp.sum(jnp.abs(xc[:, :, None, :] - yc[:, None, :, :]) ** 2, -1)
        log_w = jnp.log(1.0 / H + 1e-8)
        u = SINK_EPS * (log_w - jax.nn.logsumexp(-Cm / SINK_EPS, axis=-1))
        Mt = (-Cm + u[:, :, None]) / SINK_EPS
        v = SINK_EPS * (log_w - jax.nn.logsumexp(Mt, axis=-2))
        pi = jnp.exp((-Cm + u[:, :, None] + v[:, None, :]) / SINK_EPS)
        costs.append(jnp.sum(pi * Cm, axis=(-2, -1)))    # (N,)
    cost = jnp.stack(costs, axis=-1)                     # (N, C)
    return jnp.sum(jnp.sqrt(cost * cost + CHARB_EPS))


if __name__ == "__main__":
    key = jax.random.PRNGKey(0)
    kx, ky = jax.random.split(key)
    N, C, H, W = 2, 4, 16, 16
    x = jax.random.normal(kx, (N, C, H, W), dtype=jnp.float32)
    y = jax.random.normal(ky, (N, C, H, W), dtype=jnp.float32)

    loss = l1_charbonnier_w_loss(x, y)
    loss = jax.block_until_ready(loss)

    ref = _reference_loss(x, y)
    # Slightly relaxed tolerance: the Gram-matrix cost formulation has f32
    # cancellation error that gets amplified by the 1/eps = 100 scaling.
    assert jnp.allclose(loss, ref, rtol=1e-2, atol=1e-2), (loss, ref)

    print("KERNEL_OK")
</pallas_src>

<mosaic_0001>
module attributes {stable_mosaic.version = 11 : i64} {
  func.func @_sinkhorn_cost_kernel(%arg0: i32, %arg1: memref<8x16x16xf32, #tpu.memory_space<vmem>>, %arg2: memref<8x16x16xf32, #tpu.memory_space<vmem>>, %arg3: memref<8x1xf32, #tpu.memory_space<vmem>>) attributes {dimension_semantics = [#tpu.dimension_semantics<parallel>], iteration_bounds = array<i64: 1>, scalar_prefetch = 0 : i64, scratch_operands = 0 : i64, tpu.core_type = #tpu.core_type<tc>, window_params = [{transform_indices = @transform_0, window_bounds = array<i64: 8, 16, 16>}, {transform_indices = @transform_1, window_bounds = array<i64: 8, 16, 16>}, {transform_indices = @transform_2, window_bounds = array<i64: 8, 1>}]} {
    %c0 = arith.constant 0 : index
    %c0_0 = arith.constant 0 : index
    %c0_1 = arith.constant 0 : index
    %0 = vector.load %arg1[%c0, %c0_0, %c0_1] : memref<8x16x16xf32, #tpu.memory_space<vmem>>, vector<8x16x16xf32>
    %c0_2 = arith.constant 0 : index
    %c0_3 = arith.constant 0 : index
    %c0_4 = arith.constant 0 : index
    %1 = vector.load %arg2[%c0_2, %c0_3, %c0_4] : memref<8x16x16xf32, #tpu.memory_space<vmem>>, vector<8x16x16xf32>
    "tpu.trace_start"() <{level = 10 : i32, message = "biw,bjw->bij"}> : () -> ()
    %cst = arith.constant dense<0.000000e+00> : vector<8x16x16xf32>
    %2 = tpu.matmul %0, %1, %cst {dimension_numbers = #tpu.dot_dimension_numbers<[2], [2], [1], [1], [0, 0, 0, 1, 1, 1], [0], [0]>} : vector<8x16x16xf32>, vector<8x16x16xf32>, vector<8x16x16xf32> -> vector<8x16x16xf32>
    "tpu.trace_stop"() : () -> ()
    %3 = arith.mulf %0, %0 : vector<8x16x16xf32>
    %cst_5 = arith.constant dense<0.000000e+00> : vector<8x16xf32>
    %4 = vector.multi_reduction <add>, %3, %cst_5 [2] : vector<8x16x16xf32> to vector<8x16xf32>
    %5 = vector.shape_cast %4 : vector<8x16xf32> to vector<8x16x1xf32>
    %6 = arith.mulf %1, %1 : vector<8x16x16xf32>
    %cst_6 = arith.constant dense<0.000000e+00> : vector<8x16xf32>
    %7 = vector.multi_reduction <add>, %6, %cst_6 [2] : vector<8x16x16xf32> to vector<8x16xf32>
    %8 = vector.shape_cast %7 : vector<8x16xf32> to vector<8x16x1xf32>
    %9 = tpu.transpose %8, [0, 2, 1] : vector<8x16x1xf32> -> vector<8x1x16xf32>
    %10 = vector.broadcast %5 : vector<8x16x1xf32> to vector<8x16x16xf32>
    %11 = vector.broadcast %9 : vector<8x1x16xf32> to vector<8x16x16xf32>
    %12 = arith.addf %10, %11 : vector<8x16x16xf32>
    %cst_7 = arith.constant 2.000000e+00 : f32
    %13 = vector.broadcast %cst_7 : f32 to vector<8x16x16xf32>
    %14 = arith.mulf %13, %2 : vector<8x16x16xf32>
    %15 = arith.subf %12, %14 : vector<8x16x16xf32>
    %cst_8 = arith.constant 0.000000e+00 : f32
    %16 = vector.broadcast %cst_8 : f32 to vector<8x16x16xf32>
    %17 = arith.maximumf %15, %16 : vector<8x16x16xf32>
    %cst_9 = arith.constant 0.0625000075 : f32
    %18 = math.log %cst_9 : f32
    %cst_10 = arith.constant -1.000000e+02 : f32
    %19 = vector.broadcast %cst_10 : f32 to vector<8x16x16xf32>
    %20 = arith.mulf %17, %19 : vector<8x16x16xf32>
    %cst_11 = arith.constant dense<0xFF800000> : vector<8x16xf32>
    %21 = vector.multi_reduction <maximumf>, %20, %cst_11 [2] : vector<8x16x16xf32> to vector<8x16xf32>
    %22 = vector.shape_cast %21 : vector<8x16xf32> to vector<8x16x1xf32>
    %23 = vector.broadcast %22 : vector<8x16x1xf32> to vector<8x16x16xf32>
    %24 = arith.subf %20, %23 : vector<8x16x16xf32>
    %25 = math.exp %24 : vector<8x16x16xf32>
    %cst_12 = arith.constant dense<0.000000e+00> : vector<8x16xf32>
    %26 = vector.multi_reduction <add>, %25, %cst_12 [2] : vector<8x16x16xf32> to vector<8x16xf32>
    %27 = vector.shape_cast %26 : vector<8x16xf32> to vector<8x16x1xf32>
    %28 = math.log %27 : vector<8x16x1xf32>
    %29 = arith.addf %28, %22 : vector<8x16x1xf32>
    %30 = vector.broadcast %18 : f32 to vector<8x16x1xf32>
    %31 = arith.subf %30, %29 : vector<8x16x1xf32>
    %32 = vector.broadcast %31 : vector<8x16x1xf32> to vector<8x16x16xf32>
    %33 = arith.addf %20, %32 : vector<8x16x16xf32>
    %cst_13 = arith.constant dense<0xFF800000> : vector<8x16xf32>
    %34 = vector.multi_reduction <maximumf>, %33, %cst_13 [1] : vector<8x16x16xf32> to vector<8x16xf32>
    %35 = vector.shape_cast %34 : vector<8x16xf32> to vector<8x1x16xf32>
    %36 = vector.broadcast %35 : vector<8x1x16xf32> to vector<8x16x16xf32>
    %37 = arith.subf %33, %36 : vector<8x16x16xf32>
    %38 = math.exp %37 : vector<8x16x16xf32>
    %cst_14 = arith.constant dense<0.000000e+00> : vector<8x16xf32>
    %39 = vector.multi_reduction <add>, %38, %cst_14 [1] : vector<8x16x16xf32> to vector<8x16xf32>
    %40 = vector.shape_cast %39 : vector<8x16xf32> to vector<8x1x16xf32>
    %41 = math.log %40 : vector<8x1x16xf32>
    %42 = arith.addf %41, %35 : vector<8x1x16xf32>
    %43 = vector.broadcast %18 : f32 to vector<8x1x16xf32>
    %44 = arith.subf %43, %42 : vector<8x1x16xf32>
    %45 = arith.addf %44, %35 : vector<8x1x16xf32>
    %46 = math.exp %45 : vector<8x1x16xf32>
    %47 = vector.broadcast %46 : vector<8x1x16xf32> to vector<8x16x16xf32>
    %48 = arith.mulf %38, %47 : vector<8x16x16xf32>
    %49 = arith.mulf %48, %17 : vector<8x16x16xf32>
    %cst_15 = arith.constant dense<0.000000e+00> : vector<8x16xf32>
    %50 = vector.multi_reduction <add>, %49, %cst_15 [2] : vector<8x16x16xf32> to vector<8x16xf32>
    %51 = vector.shape_cast %50 : vector<8x16xf32> to vector<8x16x1xf32>
    %cst_16 = arith.constant dense<0.000000e+00> : vector<8x1xf32>
    %52 = vector.multi_reduction <add>, %51, %cst_16 [1] : vector<8x16x1xf32> to vector<8x1xf32>
    %c0_17 = arith.constant 0 : index
    %c0_18 = arith.constant 0 : index
    %53 = vector.load %arg3[%c0_17, %c0_18] : memref<8x1xf32, #tpu.memory_space<vmem>>, vector<8x1xf32>
    tpu.vector_store %arg3[%c0_17, %c0_18], %52 {strides = array<i32>} : memref<8x1xf32, #tpu.memory_space<vmem>>, vector<8x1xf32>,
    return
  }
  func.func @transform_0(%arg0: i32) -> (i32, i32, i32) {
    %c0_i32 = arith.constant 0 : i32
    %c0_i32_0 = arith.constant 0 : i32
    %c0_i32_1 = arith.constant 0 : i32
    return %arg0, %c0_i32, %c0_i32_0 : i32, i32, i32
  }
  func.func @transform_1(%arg0: i32) -> (i32, i32, i32) {
    %c0_i32 = arith.constant 0 : i32
    %c0_i32_0 = arith.constant 0 : i32
    %c0_i32_1 = arith.constant 0 : i32
    return %arg0, %c0_i32, %c0_i32_0 : i32, i32, i32
  }
  func.func @transform_2(%arg0: i32) -> (i32, i32) {
    %c0_i32 = arith.constant 0 : i32
    %c0_i32_0 = arith.constant 0 : i32
    return %arg0, %c0_i32 : i32, i32
  }
}

</mosaic_0001>

<llo_original>
// kernel: l1_charbonnier_w_loss.1
$region0: #{l1_charbonnier_w_loss.1}
  #allocation0 [shape = 'u32[]', space=smem, size = 0x4, offset = 0x4, fixed_abs, tag = 'smem constant byte address 0x4 - core index']
  #allocation1 [shape = 'u32[144,128]{1,0:T(1,128)}', space=vmem, size = 0x12000, scoped, tag = 'internal scratch']
  %s0 = inlined_call_operand.hbm [shape: f32[8,16,16], index: 0, kind: input, shape index: {}]
  %s1 = inlined_call_operand.hbm [shape: f32[8,16,16], index: 1, kind: input, shape index: {}]
  %s2 = inlined_call_operand.vmem [shape: f32[8,1], index: 2, kind: output, shape index: {}]
  %s3 = sld [smem:[#allocation0]]
  $region26: #{l1_charbonnier_w_loss.1} parent=0
    _
  %s5 = ssub.s32 1, %s3
  %s6 = scalar_select 0, %s5, %s3
  $region1: #{l1_charbonnier_w_loss.1} parent=0
    #allocation2 [shape = 'u8[65536]{0}', space=vmem, size = 0x10000, scoped, tag = 'input window, operand 0, single buffered']
    #allocation3 [shape = 's32[1]{0}', space=sflag, size = 0x4, scoped, tag = 'scoped memory for l1_charbonnier_w_loss.1']
    #allocation4 [shape = 'u8[65536]{0}', space=vmem, size = 0x10000, scoped, tag = 'input window, operand 1, single buffered']
    #allocation5 [shape = 's32[1]{0}', space=sflag, size = 0x4, scoped, tag = 'scoped memory for l1_charbonnier_w_loss.1']
    %7 = vsyncpa [#allocation3], 0
    %8 = vsyncpa [#allocation5], 0
    // Predicated region
    $region2: #{l1_charbonnier_w_loss.1} parent=1 // pred_check
      _
    $region3: #{l1_charbonnier_w_loss.1} parent=1 // pred_check_branch
      %10 = sbr.rel (0) target = $region5
    $region4: #{l1_charbonnier_w_loss.1} parent=1 // pred_region
      %s12 = ssub.s32 2048, 2048
      %13 = vsyncadd [#allocation3], %s12
      %s14 = sshll.u32 [#allocation2], 4
      %s15 = int_to_ptr.vmem [resolvable:$true] %s14
      %20 = dma.hbm_to_vmem [thread:$0]  %s0, 2048, %s15, [#allocation3], 128, 128, 8
    $region5: #{l1_charbonnier_w_loss.1} parent=1 // pred_fallthru
      _
    // Predicated region
    $region6: #{l1_charbonnier_w_loss.1} parent=1 // pred_check
      _
    $region7: #{l1_charbonnier_w_loss.1} parent=1 // pred_check_branch
      %22 = sbr.rel (0) target = $region9
    $region8: #{l1_charbonnier_w_loss.1} parent=1 // pred_region
      %s24 = ssub.s32 2048, 2048
      %25 = vsyncadd [#allocation5], %s24
      %s26 = sshll.u32 [#allocation4], 4
      %s27 = int_to_ptr.vmem [resolvable:$true] %s26
      %32 = dma.hbm_to_vmem [thread:$0]  %s1, 2048, %s27, [#allocation5], 128, 128, 8
    $region9: #{l1_charbonnier_w_loss.1} parent=1 // pred_fallthru
      _
    // Predicated region
    $region10: #{l1_charbonnier_w_loss.1} parent=1 // pred_check
      _
    $region11: #{l1_charbonnier_w_loss.1} parent=1 // pred_check_branch
      %34 = sbr.rel (0) target = $region13
    $region12: #{l1_charbonnier_w_loss.1} parent=1 // pred_region
      %35 = dma.done [#allocation3], 2048
    $region13: #{l1_charbonnier_w_loss.1} parent=1 // pred_fallthru
      _
    // Predicated region
    $region14: #{l1_charbonnier_w_loss.1} parent=1 // pred_check
      _
    $region15: #{l1_charbonnier_w_loss.1} parent=1 // pred_check_branch
      %37 = sbr.rel (0) target = $region17
    $region16: #{l1_charbonnier_w_loss.1} parent=1 // pred_region
      %38 = dma.done [#allocation5], 2048
    $region17: #{l1_charbonnier_w_loss.1} parent=1 // pred_fallthru
      _
    %v39 = vld [vmem:[#allocation2] sm:$0xff]
    %v40 = vld [vmem:[#allocation2 + $0x8] sm:$0xff]
    %v41 = vld [vmem:[#allocation2 + $0x10] sm:$0xff]
    %v42 = vld [vmem:[#allocation2 + $0x18] sm:$0xff]
    %v43 = vld [vmem:[#allocation2 + $0x20] sm:$0xff]
    %v44 = vld [vmem:[#allocation2 + $0x28] sm:$0xff]
    %v45 = vld [vmem:[#allocation2 + $0x30] sm:$0xff]
    %v46 = vld [vmem:[#allocation2 + $0x38] sm:$0xff]
    %v47 = vld [vmem:[#allocation2 + $0x40] sm:$0xff]
    %v48 = vld [vmem:[#allocation2 + $0x48] sm:$0xff]
    %v49 = vld [vmem:[#allocation2 + $0x50] sm:$0xff]
    %v50 = vld [vmem:[#allocation2 + $0x58] sm:$0xff]
    %v51 = vld [vmem:[#allocation2 + $0x60] sm:$0xff]
    %v52 = vld [vmem:[#allocation2 + $0x68] sm:$0xff]
    %v53 = vld [vmem:[#allocation2 + $0x70] sm:$0xff]
    %v54 = vld [vmem:[#allocation2 + $0x78] sm:$0xff]
    %v55 = vld [vmem:[#allocation4] sm:$0xff]
    %v56 = vld [vmem:[#allocation4 + $0x8] sm:$0xff]
    %v57 = vld [vmem:[#allocation4 + $0x10] sm:$0xff]
    %v58 = vld [vmem:[#allocation4 + $0x18] sm:$0xff]
    %v59 = vld [vmem:[#allocation4 + $0x20] sm:$0xff]
    %v60 = vld [vmem:[#allocation4 + $0x28] sm:$0xff]
    %v61 = vld [vmem:[#allocation4 + $0x30] sm:$0xff]
    %v62 = vld [vmem:[#allocation4 + $0x38] sm:$0xff]
    %v63 = vld [vmem:[#allocation4 + $0x40] sm:$0xff]
    %v64 = vld [vmem:[#allocation4 + $0x48] sm:$0xff]
    %v65 = vld [vmem:[#allocation4 + $0x50] sm:$0xff]
    %v66 = vld [vmem:[#allocation4 + $0x58] sm:$0xff]
    %v67 = vld [vmem:[#allocation4 + $0x60] sm:$0xff]
    %v68 = vld [vmem:[#allocation4 + $0x68] sm:$0xff]
    %v69 = vld [vmem:[#allocation4 + $0x70] sm:$0xff]
    %v70 = vld [vmem:[#allocation4 + $0x78] sm:$0xff]
    %vm71 = vcmask 130048
    %v73 = vsel %vm71, %v39, 0
    %v76 = vsel %vm71, %v40, 0
    %v79 = vsel %vm71, %v55, 0
    %v82 = vsel %vm71, %v56, 0
    %84 = vmatprep.subr.mxu0 0.0
    %85 = vmatpush1.xpose.msra.mxu0 0.0
    %86 = vmatprep.subr.mxu0 0.0
    %87 = vmatpush1.xpose.msra.mxu0 0.0
    %88 = vmatprep.subr.mxu0 0.0
    %89 = vmatpush1.xpose.msra.mxu0 0.0
    %90 = vmatprep.subr.mxu0 0.0
    %91 = vmatpush1.xpose.msra.mxu0 0.0
    %92 = vmatprep.subr.mxu0 0.0
    %93 = vmatpush1.xpose.msra.mxu0 0.0
    %94 = vmatprep.subr.mxu0 0.0
    %95 = vmatpush1.xpose.msra.mxu0 0.0
    %96 = vmatprep.subr.mxu0 0.0
    %97 = vmatpush1.xpose.msra.mxu0 0.0
    %98 = vmatprep.subr.mxu0 0.0
    %99 = vmatpush1.xpose.msra.mxu0 0.0
    %100 = vmatprep.subr.mxu0 0.0
    %101 = vmatpush1.xpose.msra.mxu0 0.0
    %102 = vmatprep.subr.mxu0 0.0
    %103 = vmatpush1.xpose.msra.mxu0 0.0
    %104 = vmatprep.subr.mxu0 0.0
    %105 = vmatpush1.xpose.msra.mxu0 0.0
    %106 = vmatprep.subr.mxu0 0.0
    %107 = vmatpush1.xpose.msra.mxu0 0.0
    %108 = vmatprep.subr.mxu0 0.0
    %109 = vmatpush1.xpose.msra.mxu0 0.0
    %110 = vmatprep.subr.mxu0 0.0
    %111 = vmatpush1.xpose.msra.mxu0 0.0
    %112 = vmatprep.subr.mxu0 0.0
    %113 = vmatpush1.xpose.msra.mxu0 %v82
    %114 = vmatprep.subr.mxu0 0.0
    %115 = vmatpush1.xpose.msra.mxu0 %v79
    %116 = vmatprep.subr.mxu0 0.0
    %117 = vmatpush2.xpose.msra.mxu0 0.0
    %118 = vmatprep.subr.mxu0 0.0
    %119 = vmatpush2.xpose.msra.mxu0 0.0
    %120 = vmatprep.subr.mxu0 0.0
    %121 = vmatpush2.xpose.msra.mxu0 0.0
    %122 = vmatprep.subr.mxu0 0.0
    %123 = vmatpush2.xpose.msra.mxu0 0.0
    %124 = vmatprep.subr.mxu0 0.0
    %125 = vmatpush2.xpose.msra.mxu0 0.0
    %126 = vmatprep.subr.mxu0 0.0
    %127 = vmatpush2.xpose.msra.mxu0 0.0
    %128 = vmatprep.subr.mxu0 0.0
    %129 = vmatpush2.xpose.msra.mxu0 0.0
    %130 = vmatprep.subr.mxu0 0.0
    %131 = vmatpush2.xpose.msra.mxu0 0.0
    %132 = vmatprep.subr.mxu0 0.0
    %133 = vmatpush2.xpose.msra.mxu0 0.0
    %134 = vmatprep.subr.mxu0 0.0
    %135 = vmatpush2.xpose.msra.mxu0 0.0
    %136 = vmatprep.subr.mxu0 0.0
    %137 = vmatpush2.xpose.msra.mxu0 0.0
    %138 = vmatprep.subr.mxu0 0.0
    %139 = vmatpush2.xpose.msra.mxu0 0.0
    %140 = vmatprep.subr.mxu0 0.0
    %141 = vmatpush2.xpose.msra.mxu0 0.0
    %142 = vmatprep.subr.mxu0 0.0
    %143 = vmatpush2.xpose.msra.mxu0 0.0
    %144 = vmatprep.subr.mxu0 0.0
    %145 = vmatpush2.xpose.msra.mxu0 0.0
    %146 = vmatprep.subr.mxu0 0.0
    %147 = vmatpush2.xpose.msra.mxu0 0.0
    %148 = vmatprep.mubr.f32.mxu0 0.0
    %149 = vmatmul.mubr.f32.gmra.mxu0 %v73
    %v150 = vpop.f32.mrf.mxu0
    %v151 = vadd.f32 0.0, %v150
    %v152 = vpop.f32.mrf.mxu0
    %153 = vmatprep.mubr.f32.mxu0 0.0
    %154 = vmatmul.mubr.f32.gmra.mxu0 %v76
    %v155 = vpop.f32.mrf.mxu0
    %v156 = vadd.f32 0.0, %v155
    %v157 = vpop.f32.mrf.mxu0
    %158 = vdwg.mxu0
    %v160 = vsel %vm71, %v41, 0
    %v163 = vsel %vm71, %v42, 0
    %v166 = vsel %vm71, %v57, 0
    %v169 = vsel %vm71, %v58, 0
    %171 = vmatprep.subr.mxu0 0.0
    %172 = vmatpush1.xpose.msra.mxu0 0.0
    %173 = vmatprep.subr.mxu0 0.0
    %174 = vmatpush1.xpose.msra.mxu0 0.0
    %175 = vmatprep.subr.mxu0 0.0
    %176 = vmatpush1.xpose.msra.mxu0 0.0
    %177 = vmatprep.subr.mxu0 0.0
    %178 = vmatpush1.xpose.msra.mxu0 0.0
    %179 = vmatprep.subr.mxu0 0.0
    %180 = vmatpush1.xpose.msra.mxu0 0.0
    %181 = vmatprep.subr.mxu0 0.0
    %182 = vmatpush1.xpose.msra.mxu0 0.0
    %183 = vmatprep.subr.mxu0 0.0
    %184 = vmatpush1.xpose.msra.mxu0 0.0
    %185 = vmatprep.subr.mxu0 0.0
    %186 = vmatpush1.xpose.msra.mxu0 0.0
    %187 = vmatprep.subr.mxu0 0.0
    %188 = vmatpush1.xpose.msra.mxu0 0.0
    %189 = vmatprep.subr.mxu0 0.0
    %190 = vmatpush1.xpose.msra.mxu0 0.0
    %191 = vmatprep.subr.mxu0 0.0
    %192 = vmatpush1.xpose.msra.mxu0 0.0
    %193 = vmatprep.subr.mxu0 0.0
    %194 = vmatpush1.xpose.msra.mxu0 0.0
    %195 = vmatprep.subr.mxu0 0.0
    %196 = vmatpush1.xpose.msra.mxu0 0.0
    %197 = vmatprep.subr.mxu0 0.0
    %198 = vmatpush1.xpose.msra.mxu0 0.0
    %199 = vmatprep.subr.mxu0 0.0
    %200 = vmatpush1.xpose.msra.mxu0 %v169
    %201 = vmatprep.subr.mxu0 0.0
    %202 = vmatpush1.xpose.msra.mxu0 %v166
    %203 = vmatprep.subr.mxu0 0.0
    %204 = vmatpush2.xpose.msra.mxu0 0.0
    %205 = vmatprep.subr.mxu0 0.0
    %206 = vmatpush2.xpose.msra.mxu0 0.0
    %207 = vmatprep.subr.mxu0 0.0
    %208 = vmatpush2.xpose.msra.mxu0 0.0
    %209 = vmatprep.subr.mxu0 0.0
    %210 = vmatpush2.xpose.msra.mxu0 0.0
    %211 = vmatprep.subr.mxu0 0.0
    %212 = vmatpush2.xpose.msra.mxu0 0.0
    %213 = vmatprep.subr.mxu0 0.0
    %214 = vmatpush2.xpose.msra.mxu0 0.0
    %215 = vmatprep.subr.mxu0 0.0
    %216 = vmatpush2.xpose.msra.mxu0 0.0
    %217 = vmatprep.subr.mxu0 0.0
    %218 = vmatpush2.xpose.msra.mxu0 0.0
    %219 = vmatprep.subr.mxu0 0.0
    %220 = vmatpush2.xpose.msra.mxu0 0.0
    %221 = vmatprep.subr.mxu0 0.0
    %222 = vmatpush2.xpose.msra.mxu0 0.0
    %223 = vmatprep.subr.mxu0 0.0
    %224 = vmatpush2.xpose.msra.mxu0 0.0
    %225 = vmatprep.subr.mxu0 0.0
    %226 = vmatpush2.xpose.msra.mxu0 0.0
    %227 = vmatprep.subr.mxu0 0.0
    %228 = vmatpush2.xpose.msra.mxu0 0.0
    %229 = vmatprep.subr.mxu0 0.0
    %230 = vmatpush2.xpose.msra.mxu0 0.0
    %231 = vmatprep.subr.mxu0 0.0
    %232 = vmatpush2.xpose.msra.mxu0 0.0
    %233 = vmatprep.subr.mxu0 0.0
    %234 = vmatpush2.xpose.msra.mxu0 0.0
    %235 = vmatprep.mubr.f32.mxu0 0.0
    %236 = vmatmul.mubr.f32.gmra.mxu0 %v160
    %v237 = vpop.f32.mrf.mxu0
    %v238 = vadd.f32 0.0, %v237
    %v239 = vpop.f32.mrf.mxu0
    %240 = vmatprep.mubr.f32.mxu0 0.0
    %241 = vmatmul.mubr.f32.gmra.mxu0 %v163
    %v242 = vpop.f32.mrf.mxu0
    %v243 = vadd.f32 0.0, %v242
    %v244 = vpop.f32.mrf.mxu0
    %245 = vdwg.mxu0
    %v247 = vsel %vm71, %v43, 0
    %v250 = vsel %vm71, %v44, 0
    %v253 = vsel %vm71, %v59, 0
    %v256 = vsel %vm71, %v60, 0
    %258 = vmatprep.subr.mxu0 0.0
    %259 = vmatpush1.xpose.msra.mxu0 0.0
    %260 = vmatprep.subr.mxu0 0.0
    %261 = vmatpush1.xpose.msra.mxu0 0.0
    %262 = vmatprep.subr.mxu0 0.0
    %263 = vmatpush1.xpose.msra.mxu0 0.0
    %264 = vmatprep.subr.mxu0 0.0
    %265 = vmatpush1.xpose.msra.mxu0 0.0
    %266 = vmatprep.subr.mxu0 0.0
    %267 = vmatpush1.xpose.msra.mxu0 0.0
    %268 = vmatprep.subr.mxu0 0.0
    %269 = vmatpush1.xpose.msra.mxu0 0.0
    %270 = vmatprep.subr.mxu0 0.0
    %271 = vmatpush1.xpose.msra.mxu0 0.0
    %272 = vmatprep.subr.mxu0 0.0
    %273 = vmatpush1.xpose.msra.mxu0 0.0
    %274 = vmatprep.subr.mxu0 0.0
    %275 = vmatpush1.xpose.msra.mxu0 0.0
    %276 = vmatprep.subr.mxu0 0.0
    %277 = vmatpush1.xpose.msra.mxu0 0.0
    %278 = vmatprep.subr.mxu0 0.0
    %279 = vmatpush1.xpose.msra.mxu0 0.0
    %280 = vmatprep.subr.mxu0 0.0
    %281 = vmatpush1.xpose.msra.mxu0 0.0
    %282 = vmatprep.subr.mxu0 0.0
    %283 = vmatpush1.xpose.msra.mxu0 0.0
    %284 = vmatprep.subr.mxu0 0.0
    %285 = vmatpush1.xpose.msra.mxu0 0.0
    %286 = vmatprep.subr.mxu0 0.0
    %287 = vmatpush1.xpose.msra.mxu0 %v256
    %288 = vmatprep.subr.mxu0 0.0
    %289 = vmatpush1.xpose.msra.mxu0 %v253
    %290 = vmatprep.subr.mxu0 0.0
    %291 = vmatpush2.xpose.msra.mxu0 0.0
    %292 = vmatprep.subr.mxu0 0.0
    %293 = vmatpush2.xpose.msra.mxu0 0.0
    %294 = vmatprep.subr.mxu0 0.0
    %295 = vmatpush2.xpose.msra.mxu0 0.0
    %296 = vmatprep.subr.mxu0 0.0
    %297 = vmatpush2.xpose.msra.mxu0 0.0
    %298 = vmatprep.subr.mxu0 0.0
    %299 = vmatpush2.xpose.msra.mxu0 0.0
    %300 = vmatprep.subr.mxu0 0.0
    %301 = vmatpush2.xpose.msra.mxu0 0.0
    %302 = vmatprep.subr.mxu0 0.0
    %303 = vmatpush2.xpose.msra.mxu0 0.0
    %304 = vmatprep.subr.mxu0 0.0
    %305 = vmatpush2.xpose.msra.mxu0 0.0
    %306 = vmatprep.subr.mxu0 0.0
    %307 = vmatpush2.xpose.msra.mxu0 0.0
    %308 = vmatprep.subr.mxu0 0.0
    %309 = vmatpush2.xpose.msra.mxu0 0.0
    %310 = vmatprep.subr.mxu0 0.0
    %311 = vmatpush2.xpose.msra.mxu0 0.0
    %312 = vmatprep.subr.mxu0 0.0
    %313 = vmatpush2.xpose.msra.mxu0 0.0
    %314 = vmatprep.subr.mxu0 0.0
    %315 = vmatpush2.xpose.msra.mxu0 0.0
    %316 = vmatprep.subr.mxu0 0.0
    %317 = vmatpush2.xpose.msra.mxu0 0.0
    %318 = vmatprep.subr.mxu0 0.0
    %319 = vmatpush2.xpose.msra.mxu0 0.0
    %320 = vmatprep.subr.mxu0 0.0
    %321 = vmatpush2.xpose.msra.mxu0 0.0
    %322 = vmatprep.mubr.f32.mxu0 0.0
    %323 = vmatmul.mubr.f32.gmra.mxu0 %v247
    %v324 = vpop.f32.mrf.mxu0
    %v325 = vadd.f32 0.0, %v324
    %v326 = vpop.f32.mrf.mxu0
    %327 = vmatprep.mubr.f32.mxu0 0.0
    %328 = vmatmul.mubr.f32.gmra.mxu0 %v250
    %v329 = vpop.f32.mrf.mxu0
    %v330 = vadd.f32 0.0, %v329
    %v331 = vpop.f32.mrf.mxu0
    %332 = vdwg.mxu0
    %v334 = vsel %vm71, %v45, 0
    %v337 = vsel %vm71, %v46, 0
    %v340 = vsel %vm71, %v61, 0
    %v343 = vsel %vm71, %v62, 0
    %345 = vmatprep.subr.mxu0 0.0
    %346 = vmatpush1.xpose.msra.mxu0 0.0
    %347 = vmatprep.subr.mxu0 0.0
    %348 = vmatpush1.xpose.msra.mxu0 0.0
    %349 = vmatprep.subr.mxu0 0.0
    %350 = vmatpush1.xpose.msra.mxu0 0.0
    %351 = vmatprep.subr.mxu0 0.0
    %352 = vmatpush1.xpose.msra.mxu0 0.0
    %353 = vmatprep.subr.mxu0 0.0
    %354 = vmatpush1.xpose.msra.mxu0 0.0
    %355 = vmatprep.subr.mxu0 0.0
    %356 = vmatpush1.xpose.msra.mxu0 0.0
    %357 = vmatprep.subr.mxu0 0.0
    %358 = vmatpush1.xpose.msra.mxu0 0.0
    %359 = vmatprep.subr.mxu0 0.0
    %360 = vmatpush1.xpose.msra.mxu0 0.0
    %361 = vmatprep.subr.mxu0 0.0
    %362 = vmatpush1.xpose.msra.mxu0 0.0
    %363 = vmatprep.subr.mxu0 0.0
    %364 = vmatpush1.xpose.msra.mxu0 0.0
    %365 = vmatprep.subr.mxu0 0.0
    %366 = vmatpush1.xpose.msra.mxu0 0.0
    %367 = vmatprep.subr.mxu0 0.0
    %368 = vmatpush1.xpose.msra.mxu0 0.0
    %369 = vmatprep.subr.mxu0 0.0
    %370 = vmatpush1.xpose.msra.mxu0 0.0
    %371 = vmatprep.subr.mxu0 0.0
    %372 = vmatpush1.xpose.msra.mxu0 0.0
    %373 = vmatprep.subr.mxu0 0.0
    %374 = vmatpush1.xpose.msra.mxu0 %v343
    %375 = vmatprep.subr.mxu0 0.0
    %376 = vmatpush1.xpose.msra.mxu0 %v340
    %377 = vmatprep.subr.mxu0 0.0
    %378 = vmatpush2.xpose.msra.mxu0 0.0
    %379 = vmatprep.subr.mxu0 0.0
    %380 = vmatpush2.xpose.msra.mxu0 0.0
    %381 = vmatprep.subr.mxu0 0.0
    %382 = vmatpush2.xpose.msra.mxu0 0.0
    %383 = vmatprep.subr.mxu0 0.0
    %384 = vmatpush2.xpose.msra.mxu0 0.0
    %385 = vmatprep.subr.mxu0 0.0
    %386 = vmatpush2.xpose.msra.mxu0 0.0
    %387 = vmatprep.subr.mxu0 0.0
    %388 = vmatpush2.xpose.msra.mxu0 0.0
    %389 = vmatprep.subr.mxu0 0.0
    %390 = vmatpush2.xpose.msra.mxu0 0.0
    %391 = vmatprep.subr.mxu0 0.0
    %392 = vmatpush2.xpose.msra.mxu0 0.0
    %393 = vmatprep.subr.mxu0 0.0
    %394 = vmatpush2.xpose.msra.mxu0 0.0
    %395 = vmatprep.subr.mxu0 0.0
    %396 = vmatpush2.xpose.msra.mxu0 0.0
    %397 = vmatprep.subr.mxu0 0.0
    %398 = vmatpush2.xpose.msra.mxu0 0.0
    %399 = vmatprep.subr.mxu0 0.0
    %400 = vmatpush2.xpose.msra.mxu0 0.0
    %401 = vmatprep.subr.mxu0 0.0
    %402 = vmatpush2.xpose.msra.mxu0 0.0
    %403 = vmatprep.subr.mxu0 0.0
    %404 = vmatpush2.xpose.msra.mxu0 0.0
    %405 = vmatprep.subr.mxu0 0.0
    %406 = vmatpush2.xpose.msra.mxu0 0.0
    %407 = vmatprep.subr.mxu0 0.0
    %408 = vmatpush2.xpose.msra.mxu0 0.0
    %409 = vmatprep.mubr.f32.mxu0 0.0
    %410 = vmatmul.mubr.f32.gmra.mxu0 %v334
    %v411 = vpop.f32.mrf.mxu0
    %v412 = vadd.f32 0.0, %v411
    %v413 = vpop.f32.mrf.mxu0
    %414 = vmatprep.mubr.f32.mxu0 0.0
    %415 = vmatmul.mubr.f32.gmra.mxu0 %v337
    %v416 = vpop.f32.mrf.mxu0
    %v417 = vadd.f32 0.0, %v416
    %v418 = vpop.f32.mrf.mxu0
    %419 = vdwg.mxu0
    %v421 = vsel %vm71, %v47, 0
    %v424 = vsel %vm71, %v48, 0
    %v427 = vsel %vm71, %v63, 0
    %v430 = vsel %vm71, %v64, 0
    %432 = vmatprep.subr.mxu0 0.0
    %433 = vmatpush1.xpose.msra.mxu0 0.0
    %434 = vmatprep.subr.mxu0 0.0
    %435 = vmatpush1.xpose.msra.mxu0 0.0
    %436 = vmatprep.subr.mxu0 0.0
    %437 = vmatpush1.xpose.msra.mxu0 0.0
    %438 = vmatprep.subr.mxu0 0.0
    %439 = vmatpush1.xpose.msra.mxu0 0.0
    %440 = vmatprep.subr.mxu0 0.0
    %441 = vmatpush1.xpose.msra.mxu0 0.0
    %442 = vmatprep.subr.mxu0 0.0
    %443 = vmatpush1.xpose.msra.mxu0 0.0
    %444 = vmatprep.subr.mxu0 0.0
    %445 = vmatpush1.xpose.msra.mxu0 0.0
    %446 = vmatprep.subr.mxu0 0.0
    %447 = vmatpush1.xpose.msra.mxu0 0.0
    %448 = vmatprep.subr.mxu0 0.0
    %449 = vmatpush1.xpose.msra.mxu0 0.0
    %450 = vmatprep.subr.mxu0 0.0
    %451 = vmatpush1.xpose.msra.mxu0 0.0
    %452 = vmatprep.subr.mxu0 0.0
    %453 = vmatpush1.xpose.msra.mxu0 0.0
    %454 = vmatprep.subr.mxu0 0.0
    %455 = vmatpush1.xpose.msra.mxu0 0.0
    %456 = vmatprep.subr.mxu0 0.0
    %457 = vmatpush1.xpose.msra.mxu0 0.0
    %458 = vmatprep.subr.mxu0 0.0
    %459 = vmatpush1.xpose.msra.mxu0 0.0
    %460 = vmatprep.subr.mxu0 0.0
    %461 = vmatpush1.xpose.msra.mxu0 %v430
    %462 = vmatprep.subr.mxu0 0.0
    %463 = vmatpush1.xpose.msra.mxu0 %v427
    %464 = vmatprep.subr.mxu0 0.0
    %465 = vmatpush2.xpose.msra.mxu0 0.0
    %466 = vmatprep.subr.mxu0 0.0
    %467 = vmatpush2.xpose.msra.mxu0 0.0
    %468 = vmatprep.subr.mxu0 0.0
    %469 = vmatpush2.xpose.msra.mxu0 0.0
    %470 = vmatprep.subr.mxu0 0.0
    %471 = vmatpush2.xpose.msra.mxu0 0.0
    %472 = vmatprep.subr.mxu0 0.0
    %473 = vmatpush2.xpose.msra.mxu0 0.0
    %474 = vmatprep.subr.mxu0 0.0
    %475 = vmatpush2.xpose.msra.mxu0 0.0
    %476 = vmatprep.subr.mxu0 0.0
    %477 = vmatpush2.xpose.msra.mxu0 0.0
    %478 = vmatprep.subr.mxu0 0.0
    %479 = vmatpush2.xpose.msra.mxu0 0.0
    %480 = vmatprep.subr.mxu0 0.0
    %481 = vmatpush2.xpose.msra.mxu0 0.0
    %482 = vmatprep.subr.mxu0 0.0
    %483 = vmatpush2.xpose.msra.mxu0 0.0
    %484 = vmatprep.subr.mxu0 0.0
    %485 = vmatpush2.xpose.msra.mxu0 0.0
    %486 = vmatprep.subr.mxu0 0.0
    %487 = vmatpush2.xpose.msra.mxu0 0.0
    %488 = vmatprep.subr.mxu0 0.0
    %489 = vmatpush2.xpose.msra.mxu0 0.0
    %490 = vmatprep.subr.mxu0 0.0
    %491 = vmatpush2.xpose.msra.mxu0 0.0
    %492 = vmatprep.subr.mxu0 0.0
    %493 = vmatpush2.xpose.msra.mxu0 0.0
    %494 = vmatprep.subr.mxu0 0.0
    %495 = vmatpush2.xpose.msra.mxu0 0.0
    %496 = vmatprep.mubr.f32.mxu0 0.0
    %497 = vmatmul.mubr.f32.gmra.mxu0 %v421
    %v498 = vpop.f32.mrf.mxu0
    %v499 = vadd.f32 0.0, %v498
    %v500 = vpop.f32.mrf.mxu0
    %501 = vmatprep.mubr.f32.mxu0 0.0
    %502 = vmatmul.mubr.f32.gmra.mxu0 %v424
    %v503 = vpop.f32.mrf.mxu0
    %v504 = vadd.f32 0.0, %v503
    %v505 = vpop.f32.mrf.mxu0
    %506 = vdwg.mxu0
    %v508 = vsel %vm71, %v49, 0
    %v511 = vsel %vm71, %v50, 0
    %v514 = vsel %vm71, %v65, 0
    %v517 = vsel %vm71, %v66, 0
    %519 = vmatprep.subr.mxu0 0.0
    %520 = vmatpush1.xpose.msra.mxu0 0.0
    %521 = vmatprep.subr.mxu0 0.0
    %522 = vmatpush1.xpose.msra.mxu0 0.0
    %523 = vmatprep.subr.mxu0 0.0
    %524 = vmatpush1.xpose.msra.mxu0 0.0
    %525 = vmatprep.subr.mxu0 0.0
    %526 = vmatpush1.xpose.msra.mxu0 0.0
    %527 = vmatprep.subr.mxu0 0.0
    %528 = vmatpush1.xpose.msra.mxu0 0.0
    %529 = vmatprep.subr.mxu0 0.0
    %530 = vmatpush1.xpose.msra.mxu0 0.0
    %531 = vmatprep.subr.mxu0 0.0
    %532 = vmatpush1.xpose.msra.mxu0 0.0
    %533 = vmatprep.subr.mxu0 0.0
    %534 = vmatpush1.xpose.msra.mxu0 0.0
    %535 = vmatprep.subr.mxu0 0.0
    %536 = vmatpush1.xpose.msra.mxu0 0.0
    %537 = vmatprep.subr.mxu0 0.0
    %538 = vmatpush1.xpose.msra.mxu0 0.0
    %539 = vmatprep.subr.mxu0 0.0
    %540 = vmatpush1.xpose.msra.mxu0 0.0
    %541 = vmatprep.subr.mxu0 0.0
    %542 = vmatpush1.xpose.msra.mxu0 0.0
    %543 = vmatprep.subr.mxu0 0.0
    %544 = vmatpush1.xpose.msra.mxu0 0.0
    %545 = vmatprep.subr.mxu0 0.0
    %546 = vmatpush1.xpose.msra.mxu0 0.0
    %547 = vmatprep.subr.mxu0 0.0
    %548 = vmatpush1.xpose.msra.mxu0 %v517
    %549 = vmatprep.subr.mxu0 0.0
    %550 = vmatpush1.xpose.msra.mxu0 %v514
    %551 = vmatprep.subr.mxu0 0.0
    %552 = vmatpush2.xpose.msra.mxu0 0.0
    %553 = vmatprep.subr.mxu0 0.0
    %554 = vmatpush2.xpose.msra.mxu0 0.0
    %555 = vmatprep.subr.mxu0 0.0
    %556 = vmatpush2.xpose.msra.mxu0 0.0
    %557 = vmatprep.subr.mxu0 0.0
    %558 = vmatpush2.xpose.msra.mxu0 0.0
    %559 = vmatprep.subr.mxu0 0.0
    %560 = vmatpush2.xpose.msra.mxu0 0.0
    %561 = vmatprep.subr.mxu0 0.0
    %562 = vmatpush2.xpose.msra.mxu0 0.0
    %563 = vmatprep.subr.mxu0 0.0
    %564 = vmatpush2.xpose.msra.mxu0 0.0
    %565 = vmatprep.subr.mxu0 0.0
    %566 = vmatpush2.xpose.msra.mxu0 0.0
    %567 = vmatprep.subr.mxu0 0.0
    %568 = vmatpush2.xpose.msra.mxu0 0.0
    %569 = vmatprep.subr.mxu0 0.0
    %570 = vmatpush2.xpose.msra.mxu0 0.0
    %571 = vmatprep.subr.mxu0 0.0
    %572 = vmatpush2.xpose.msra.mxu0 0.0
    %573 = vmatprep.subr.mxu0 0.0
    %574 = vmatpush2.xpose.msra.mxu0 0.0
    %575 = vmatprep.subr.mxu0 0.0
    %576 = vmatpush2.xpose.msra.mxu0 0.0
    %577 = vmatprep.subr.mxu0 0.0
    %578 = vmatpush2.xpose.msra.mxu0 0.0
    %579 = vmatprep.subr.mxu0 0.0
    %580 = vmatpush2.xpose.msra.mxu0 0.0
    %581 = vmatprep.subr.mxu0 0.0
    %582 = vmatpush2.xpose.msra.mxu0 0.0
    %583 = vmatprep.mubr.f32.mxu0 0.0
    %584 = vmatmul.mubr.f32.gmra.mxu0 %v508
    %v585 = vpop.f32.mrf.mxu0
    %v586 = vadd.f32 0.0, %v585
    %v587 = vpop.f32.mrf.mxu0
    %588 = vmatprep.mubr.f32.mxu0 0.0
    %589 = vmatmul.mubr.f32.gmra.mxu0 %v511
    %v590 = vpop.f32.mrf.mxu0
    %v591 = vadd.f32 0.0, %v590
    %v592 = vpop.f32.mrf.mxu0
    %593 = vdwg.mxu0
    %v595 = vsel %vm71, %v51, 0
    %v598 = vsel %vm71, %v52, 0
    %v601 = vsel %vm71, %v67, 0
    %v604 = vsel %vm71, %v68, 0
    %606 = vmatprep.subr.mxu0 0.0
    %607 = vmatpush1.xpose.msra.mxu0 0.0
    %608 = vmatprep.subr.mxu0 0.0
    %609 = vmatpush1.xpose.msra.mxu0 0.0
    %610 = vmatprep.subr.mxu0 0.0
    %611 = vmatpush1.xpose.msra.mxu0 0.0
    %612 = vmatprep.subr.mxu0 0.0
    %613 = vmatpush1.xpose.msra.mxu0 0.0
    %614 = vmatprep.subr.mxu0 0.0
    %615 = vmatpush1.xpose.msra.mxu0 0.0
    %616 = vmatprep.subr.mxu0 0.0
    %617 = vmatpush1.xpose.msra.mxu0 0.0
    %618 = vmatprep.subr.mxu0 0.0
    %619 = vmatpush1.xpose.msra.mxu0 0.0
    %620 = vmatprep.subr.mxu0 0.0
    %621 = vmatpush1.xpose.msra.mxu0 0.0
    %622 = vmatprep.subr.mxu0 0.0
    %623 = vmatpush1.xpose.msra.mxu0 0.0
    %624 = vmatprep.subr.mxu0 0.0
    %625 = vmatpush1.xpose.msra.mxu0 0.0
    %626 = vmatprep.subr.mxu0 0.0
    %627 = vmatpush1.xpose.msra.mxu0 0.0
    %628 = vmatprep.subr.mxu0 0.0
    %629 = vmatpush1.xpose.msra.mxu0 0.0
    %630 = vmatprep.subr.mxu0 0.0
    %631 = vmatpush1.xpose.msra.mxu0 0.0
    %632 = vmatprep.subr.mxu0 0.0
    %633 = vmatpush1.xpose.msra.mxu0 0.0
    %634 = vmatprep.subr.mxu0 0.0
    %635 = vmatpush1.xpose.msra.mxu0 %v604
    %636 = vmatprep.subr.mxu0 0.0
    %637 = vmatpush1.xpose.msra.mxu0 %v601
    %638 = vmatprep.subr.mxu0 0.0
    %639 = vmatpush2.xpose.msra.mxu0 0.0
    %640 = vmatprep.subr.mxu0 0.0
    %641 = vmatpush2.xpose.msra.mxu0 0.0
    %642 = vmatprep.subr.mxu0 0.0
    %643 = vmatpush2.xpose.msra.mxu0 0.0
    %644 = vmatprep.subr.mxu0 0.0
    %645 = vmatpush2.xpose.msra.mxu0 0.0
    %646 = vmatprep.subr.mxu0 0.0
    %647 = vmatpush2.xpose.msra.mxu0 0.0
    %648 = vmatprep.subr.mxu0 0.0
    %649 = vmatpush2.xpose.msra.mxu0 0.0
    %650 = vmatprep.subr.mxu0 0.0
    %651 = vmatpush2.xpose.msra.mxu0 0.0
    %652 = vmatprep.subr.mxu0 0.0
    %653 = vmatpush2.xpose.msra.mxu0 0.0
    %654 = vmatprep.subr.mxu0 0.0
    %655 = vmatpush2.xpose.msra.mxu0 0.0
    %656 = vmatprep.subr.mxu0 0.0
    %657 = vmatpush2.xpose.msra.mxu0 0.0
    %658 = vmatprep.subr.mxu0 0.0
    %659 = vmatpush2.xpose.msra.mxu0 0.0
    %660 = vmatprep.subr.mxu0 0.0
    %661 = vmatpush2.xpose.msra.mxu0 0.0
    %662 = vmatprep.subr.mxu0 0.0
    %663 = vmatpush2.xpose.msra.mxu0 0.0
    %664 = vmatprep.subr.mxu0 0.0
    %665 = vmatpush2.xpose.msra.mxu0 0.0
    %666 = vmatprep.subr.mxu0 0.0
    %667 = vmatpush2.xpose.msra.mxu0 0.0
    %668 = vmatprep.subr.mxu0 0.0
    %669 = vmatpush2.xpose.msra.mxu0 0.0
    %670 = vmatprep.mubr.f32.mxu0 0.0
    %671 = vmatmul.mubr.f32.gmra.mxu0 %v595
    %v672 = vpop.f32.mrf.mxu0
    %v673 = vadd.f32 0.0, %v672
    %v674 = vpop.f32.mrf.mxu0
    %675 = vmatprep.mubr.f32.mxu0 0.0
    %676 = vmatmul.mubr.f32.gmra.mxu0 %v598
    %v677 = vpop.f32.mrf.mxu0
    %v678 = vadd.f32 0.0, %v677
    %v679 = vpop.f32.mrf.mxu0
    %680 = vdwg.mxu0
    %v682 = vsel %vm71, %v53, 0
    %v685 = vsel %vm71, %v54, 0
    %v688 = vsel %vm71, %v69, 0
    %v691 = vsel %vm71, %v70, 0
    %693 = vmatprep.subr.mxu0 0.0
    %694 = vmatpush1.xpose.msra.mxu0 0.0
    %695 = vmatprep.subr.mxu0 0.0
    %696 = vmatpush1.xpose.msra.mxu0 0.0
    %697 = vmatprep.subr.mxu0 0.0
    %698 = vmatpush1.xpose.msra.mxu0 0.0
    %699 = vmatprep.subr.mxu0 0.0
    %700 = vmatpush1.xpose.msra.mxu0 0.0
    %701 = vmatprep.subr.mxu0 0.0
    %702 = vmatpush1.xpose.msra.mxu0 0.0
    %703 = vmatprep.subr.mxu0 0.0
    %704 = vmatpush1.xpose.msra.mxu0 0.0
    %705 = vmatprep.subr.mxu0 0.0
    %706 = vmatpush1.xpose.msra.mxu0 0.0
    %707 = vmatprep.subr.mxu0 0.0
    %708 = vmatpush1.xpose.msra.mxu0 0.0
    %709 = vmatprep.subr.mxu0 0.0
    %710 = vmatpush1.xpose.msra.mxu0 0.0
    %711 = vmatprep.subr.mxu0 0.0
    %712 = vmatpush1.xpose.msra.mxu0 0.0
    %713 = vmatprep.subr.mxu0 0.0
    %714 = vmatpush1.xpose.msra.mxu0 0.0
    %715 = vmatprep.subr.mxu0 0.0
    %716 = vmatpush1.xpose.msra.mxu0 0.0
    %717 = vmatprep.subr.mxu0 0.0
    %718 = vmatpush1.xpose.msra.mxu0 0.0
    %719 = vmatprep.subr.mxu0 0.0
    %720 = vmatpush1.xpose.msra.mxu0 0.0
    %721 = vmatprep.subr.mxu0 0.0
    %722 = vmatpush1.xpose.msra.mxu0 %v691
    %723 = vmatprep.subr.mxu0 0.0
    %724 = vmatpush1.xpose.msra.mxu0 %v688
    %725 = vmatprep.subr.mxu0 0.0
    %726 = vmatpush2.xpose.msra.mxu0 0.0
    %727 = vmatprep.subr.mxu0 0.0
    %728 = vmatpush2.xpose.msra.mxu0 0.0
    %729 = vmatprep.subr.mxu0 0.0
    %730 = vmatpush2.xpose.msra.mxu0 0.0
    %731 = vmatprep.subr.mxu0 0.0
    %732 = vmatpush2.xpose.msra.mxu0 0.0
    %733 = vmatprep.subr.mxu0 0.0
    %734 = vmatpush2.xpose.msra.mxu0 0.0
    %735 = vmatprep.subr.mxu0 0.0
    %736 = vmatpush2.xpose.msra.mxu0 0.0
    %737 = vmatprep.subr.mxu0 0.0
    %738 = vmatpush2.xpose.msra.mxu0 0.0
    %739 = vmatprep.subr.mxu0 0.0
    %740 = vmatpush2.xpose.msra.mxu0 0.0
    %741 = vmatprep.subr.mxu0 0.0
    %742 = vmatpush2.xpose.msra.mxu0 0.0
    %743 = vmatprep.subr.mxu0 0.0
    %744 = vmatpush2.xpose.msra.mxu0 0.0
    %745 = vmatprep.subr.mxu0 0.0
    %746 = vmatpush2.xpose.msra.mxu0 0.0
    %747 = vmatprep.subr.mxu0 0.0
    %748 = vmatpush2.xpose.msra.mxu0 0.0
    %749 = vmatprep.subr.mxu0 0.0
    %750 = vmatpush2.xpose.msra.mxu0 0.0
    %751 = vmatprep.subr.mxu0 0.0
    %752 = vmatpush2.xpose.msra.mxu0 0.0
    %753 = vmatprep.subr.mxu0 0.0
    %754 = vmatpush2.xpose.msra.mxu0 0.0
    %755 = vmatprep.subr.mxu0 0.0
    %756 = vmatpush2.xpose.msra.mxu0 0.0
    %757 = vmatprep.mubr.f32.mxu0 0.0
    %758 = vmatmul.mubr.f32.gmra.mxu0 %v682
    %v759 = vpop.f32.mrf.mxu0
    %v760 = vadd.f32 0.0, %v759
    %v761 = vpop.f32.mrf.mxu0
    %762 = vmatprep.mubr.f32.mxu0 0.0
    %763 = vmatmul.mubr.f32.gmra.mxu0 %v685
    %v764 = vpop.f32.mrf.mxu0
    %v765 = vadd.f32 0.0, %v764
    %v766 = vpop.f32.mrf.mxu0
    %767 = vdwg.mxu0
    %v768 = vmul.f32 %v39, %v39
    %v769 = vmul.f32 %v40, %v40
    %v770 = vmul.f32 %v41, %v41
    %v771 = vmul.f32 %v42, %v42
    %v772 = vmul.f32 %v43, %v43
    %v773 = vmul.f32 %v44, %v44
    %v774 = vmul.f32 %v45, %v45
    %v775 = vmul.f32 %v46, %v46
    %v776 = vmul.f32 %v47, %v47
    %v777 = vmul.f32 %v48, %v48
    %v778 = vmul.f32 %v49, %v49
    %v779 = vmul.f32 %v50, %v50
    %v780 = vmul.f32 %v51, %v51
    %v781 = vmul.f32 %v52, %v52
    %v782 = vmul.f32 %v53, %v53
    %v783 = vmul.f32 %v54, %v54
    %v784 = vsel %vm71, %v768, 0.0
    %785 = vadd.xlane.f32.xlu0 %v784
    %v786 = vpop.xlane.xlu0 %785
    %v787 = vsel %vm71, %v769, 0.0
    %788 = vadd.xlane.f32.xlu0 %v787
    %v789 = vpop.xlane.xlu0 %788
    %v790 = vsel %vm71, %v770, 0.0
    %791 = vadd.xlane.f32.xlu0 %v790
    %v792 = vpop.xlane.xlu0 %791
    %v793 = vsel %vm71, %v771, 0.0
    %794 = vadd.xlane.f32.xlu0 %v793
    %v795 = vpop.xlane.xlu0 %794
    %v796 = vsel %vm71, %v772, 0.0
    %797 = vadd.xlane.f32.xlu0 %v796
    %v798 = vpop.xlane.xlu0 %797
    %v799 = vsel %vm71, %v773, 0.0
    %800 = vadd.xlane.f32.xlu0 %v799
    %v801 = vpop.xlane.xlu0 %800
    %v802 = vsel %vm71, %v774, 0.0
    %803 = vadd.xlane.f32.xlu0 %v802
    %v804 = vpop.xlane.xlu0 %803
    %v805 = vsel %vm71, %v775, 0.0
    %806 = vadd.xlane.f32.xlu0 %v805
    %v807 = vpop.xlane.xlu0 %806
    %v808 = vsel %vm71, %v776, 0.0
    %809 = vadd.xlane.f32.xlu0 %v808
    %v810 = vpop.xlane.xlu0 %809
    %v811 = vsel %vm71, %v777, 0.0
    %812 = vadd.xlane.f32.xlu0 %v811
    %v813 = vpop.xlane.xlu0 %812
    %v814 = vsel %vm71, %v778, 0.0
    %815 = vadd.xlane.f32.xlu0 %v814
    %v816 = vpop.xlane.xlu0 %815
    %v817 = vsel %vm71, %v779, 0.0
    %818 = vadd.xlane.f32.xlu0 %v817
    %v819 = vpop.xlane.xlu0 %818
    %v820 = vsel %vm71, %v780, 0.0
    %821 = vadd.xlane.f32.xlu0 %v820
    %v822 = vpop.xlane.xlu0 %821
    %v823 = vsel %vm71, %v781, 0.0
    %824 = vadd.xlane.f32.xlu0 %v823
    %v825 = vpop.xlane.xlu0 %824
    %v826 = vsel %vm71, %v782, 0.0
    %827 = vadd.xlane.f32.xlu0 %v826
    %v828 = vpop.xlane.xlu0 %827
    %v829 = vsel %vm71, %v783, 0.0
    %830 = vadd.xlane.f32.xlu0 %v829
    %v831 = vpop.xlane.xlu0 %830
    %v832 = vmul.f32 %v55, %v55
    %v833 = vmul.f32 %v56, %v56
    %v834 = vmul.f32 %v57, %v57
    %v835 = vmul.f32 %v58, %v58
    %v836 = vmul.f32 %v59, %v59
    %v837 = vmul.f32 %v60, %v60
    %v838 = vmul.f32 %v61, %v61
    %v839 = vmul.f32 %v62, %v62
    %v840 = vmul.f32 %v63, %v63
    %v841 = vmul.f32 %v64, %v64
    %v842 = vmul.f32 %v65, %v65
    %v843 = vmul.f32 %v66, %v66
    %v844 = vmul.f32 %v67, %v67
    %v845 = vmul.f32 %v68, %v68
    %v846 = vmul.f32 %v69, %v69
    %v847 = vmul.f32 %v70, %v70
    %v848 = vsel %vm71, %v832, 0.0
    %849 = vadd.xlane.f32.xlu0 %v848
    %v850 = vpop.xlane.xlu0 %849
    %v851 = vsel %vm71, %v833, 0.0
    %852 = vadd.xlane.f32.xlu0 %v851
    %v853 = vpop.xlane.xlu0 %852
    %v854 = vsel %vm71, %v834, 0.0
    %855 = vadd.xlane.f32.xlu0 %v854
    %v856 = vpop.xlane.xlu0 %855
    %v857 = vsel %vm71, %v835, 0.0
    %858 = vadd.xlane.f32.xlu0 %v857
    %v859 = vpop.xlane.xlu0 %858
    %v860 = vsel %vm71, %v836, 0.0
    %861 = vadd.xlane.f32.xlu0 %v860
    %v862 = vpop.xlane.xlu0 %861
    %v863 = vsel %vm71, %v837, 0.0
    %864 = vadd.xlane.f32.xlu0 %v863
    %v865 = vpop.xlane.xlu0 %864
    %v866 = vsel %vm71, %v838, 0.0
    %867 = vadd.xlane.f32.xlu0 %v866
    %v868 = vpop.xlane.xlu0 %867
    %v869 = vsel %vm71, %v839, 0.0
    %870 = vadd.xlane.f32.xlu0 %v869
    %v871 = vpop.xlane.xlu0 %870
    %v872 = vsel %vm71, %v840, 0.0
    %873 = vadd.xlane.f32.xlu0 %v872
    %v874 = vpop.xlane.xlu0 %873
    %v875 = vsel %vm71, %v841, 0.0
    %876 = vadd.xlane.f32.xlu0 %v875
    %v877 = vpop.xlane.xlu0 %876
    %v878 = vsel %vm71, %v842, 0.0
    %879 = vadd.xlane.f32.xlu0 %v878
    %v880 = vpop.xlane.xlu0 %879
    %v881 = vsel %vm71, %v843, 0.0
    %882 = vadd.xlane.f32.xlu0 %v881
    %v883 = vpop.xlane.xlu0 %882
    %v884 = vsel %vm71, %v844, 0.0
    %885 = vadd.xlane.f32.xlu0 %v884
    %v886 = vpop.xlane.xlu0 %885
    %v887 = vsel %vm71, %v845, 0.0
    %888 = vadd.xlane.f32.xlu0 %v887
    %v889 = vpop.xlane.xlu0 %888
    %v890 = vsel %vm71, %v846, 0.0
    %891 = vadd.xlane.f32.xlu0 %v890
    %v892 = vpop.xlane.xlu0 %891
    %v893 = vsel %vm71, %v847, 0.0
    %894 = vadd.xlane.f32.xlu0 %v893
    %v895 = vpop.xlane.xlu0 %894
    %896 = vxpose.xlu0.b32.start [1/16] %v850, 128
    %897 = vxpose.xlu0.b32.cont [2/16] %v853, 128
    %898 = vxpose.xlu0.b32.cont [3/16] 0.0, 128
    %899 = vxpose.xlu0.b32.cont [4/16] 0.0, 128
    %900 = vxpose.xlu0.b32.cont [5/16] 0.0, 128
    %901 = vxpose.xlu0.b32.cont [6/16] 0.0, 128
    %902 = vxpose.xlu0.b32.cont [7/16] 0.0, 128
    %903 = vxpose.xlu0.b32.cont [8/16] 0.0, 128
    %904 = vxpose.xlu0.b32.cont [9/16] 0.0, 128
    %905 = vxpose.xlu0.b32.cont [10/16] 0.0, 128
    %906 = vxpose.xlu0.b32.cont [11/16] 0.0, 128
    %907 = vxpose.xlu0.b32.cont [12/16] 0.0, 128
    %908 = vxpose.xlu0.b32.cont [13/16] 0.0, 128
    %909 = vxpose.xlu0.b32.cont [14/16] 0.0, 128
    %910 = vxpose.xlu0.b32.cont [15/16] 0.0, 128
    %911 = vxpose.xlu0.b32.end [16/16] 0.0, 128
    %v912 = vpop.trf.xlu0
    %v913 = vpop.trf.xlu0
    %v914 = vpop.trf.xlu0
    %v915 = vpop.trf.xlu0
    %v916 = vpop.trf.xlu0
    %v917 = vpop.trf.xlu0
    %v918 = vpop.trf.xlu0
    %v919 = vpop.trf.xlu0
    %v920 = vpop.trf.xlu0
    %v921 = vpop.trf.xlu0
    %v922 = vpop.trf.xlu0
    %v923 = vpop.trf.xlu0
    %v924 = vpop.trf.xlu0
    %v925 = vpop.trf.xlu0
    %v926 = vpop.trf.xlu0
    %v927 = vpop.trf.xlu0
    %928 = vxpose.xlu0.b32.start [1/16] %v856, 128
    %929 = vxpose.xlu0.b32.cont [2/16] %v859, 128
    %930 = vxpose.xlu0.b32.cont [3/16] 0.0, 128
    %931 = vxpose.xlu0.b32.cont [4/16] 0.0, 128
    %932 = vxpose.xlu0.b32.cont [5/16] 0.0, 128
    %933 = vxpose.xlu0.b32.cont [6/16] 0.0, 128
    %934 = vxpose.xlu0.b32.cont [7/16] 0.0, 128
    %935 = vxpose.xlu0.b32.cont [8/16] 0.0, 128
    %936 = vxpose.xlu0.b32.cont [9/16] 0.0, 128
    %937 = vxpose.xlu0.b32.cont [10/16] 0.0, 128
    %938 = vxpose.xlu0.b32.cont [11/16] 0.0, 128
    %939 = vxpose.xlu0.b32.cont [12/16] 0.0, 128
    %940 = vxpose.xlu0.b32.cont [13/16] 0.0, 128
    %941 = vxpose.xlu0.b32.cont [14/16] 0.0, 128
    %942 = vxpose.xlu0.b32.cont [15/16] 0.0, 128
    %943 = vxpose.xlu0.b32.end [16/16] 0.0, 128
    %v944 = vpop.trf.xlu0
    %v945 = vpop.trf.xlu0
    %v946 = vpop.trf.xlu0
    %v947 = vpop.trf.xlu0
    %v948 = vpop.trf.xlu0
    %v949 = vpop.trf.xlu0
    %v950 = vpop.trf.xlu0
    %v951 = vpop.trf.xlu0
    %v952 = vpop.trf.xlu0
    %v953 = vpop.trf.xlu0
    %v954 = vpop.trf.xlu0
    %v955 = vpop.trf.xlu0
    %v956 = vpop.trf.xlu0
    %v957 = vpop.trf.xlu0
    %v958 = vpop.trf.xlu0
    %v959 = vpop.trf.xlu0
    %960 = vxpose.xlu0.b32.start [1/16] %v862, 128
    %961 = vxpose.xlu0.b32.cont [2/16] %v865, 128
    %962 = vxpose.xlu0.b32.cont [3/16] 0.0, 128
    %963 = vxpose.xlu0.b32.cont [4/16] 0.0, 128
    %964 = vxpose.xlu0.b32.cont [5/16] 0.0, 128
    %965 = vxpose.xlu0.b32.cont [6/16] 0.0, 128
    %966 = vxpose.xlu0.b32.cont [7/16] 0.0, 128
    %967 = vxpose.xlu0.b32.cont [8/16] 0.0, 128
    %968 = vxpose.xlu0.b32.cont [9/16] 0.0, 128
    %969 = vxpose.xlu0.b32.cont [10/16] 0.0, 128
    %970 = vxpose.xlu0.b32.cont [11/16] 0.0, 128
    %971 = vxpose.xlu0.b32.cont [12/16] 0.0, 128
    %972 = vxpose.xlu0.b32.cont [13/16] 0.0, 128
    %973 = vxpose.xlu0.b32.cont [14/16] 0.0, 128
    %974 = vxpose.xlu0.b32.cont [15/16] 0.0, 128
    %975 = vxpose.xlu0.b32.end [16/16] 0.0, 128
    %v976 = vpop.trf.xlu0
    %v977 = vpop.trf.xlu0
    %v978 = vpop.trf.xlu0
    %v979 = vpop.trf.xlu0
    %v980 = vpop.trf.xlu0
    %v981 = vpop.trf.xlu0
    %v982 = vpop.trf.xlu0
    %v983 = vpop.trf.xlu0
    %v984 = vpop.trf.xlu0
    %v985 = vpop.trf.xlu0
    %v986 = vpop.trf.xlu0
    %v987 = vpop.trf.xlu0
    %v988 = vpop.trf.xlu0
    %v989 = vpop.trf.xlu0
    %v990 = vpop.trf.xlu0
    %v991 = vpop.trf.xlu0
    %992 = vxpose.xlu0.b32.start [1/16] %v868, 128
    %993 = vxpose.xlu0.b32.cont [2/16] %v871, 128
    %994 = vxpose.xlu0.b32.cont [3/16] 0.0, 128
    %995 = vxpose.xlu0.b32.cont [4/16] 0.0, 128
    %996 = vxpose.xlu0.b32.cont [5/16] 0.0, 128
    %997 = vxpose.xlu0.b32.cont [6/16] 0.0, 128
    %998 = vxpose.xlu0.b32.cont [7/16] 0.0, 128
    %999 = vxpose.xlu0.b32.cont [8/16] 0.0, 128
    %1000 = vxpose.xlu0.b32.cont [9/16] 0.0, 128
    %1001 = vxpose.xlu0.b32.cont [10/16] 0.0, 128
    %1002 = vxpose.xlu0.b32.cont [11/16] 0.0, 128
    %1003 = vxpose.xlu0.b32.cont [12/16] 0.0, 128
    %1004 = vxpose.xlu0.b32.cont [13/16] 0.0, 128
    %1005 = vxpose.xlu0.b32.cont [14/16] 0.0, 128
    %1006 = vxpose.xlu0.b32.cont [15/16] 0.0, 128
    %1007 = vxpose.xlu0.b32.end [16/16] 0.0, 128
    %v1008 = vpop.trf.xlu0
    %v1009 = vpop.trf.xlu0
    %v1010 = vpop.trf.xlu0
    %v1011 = vpop.trf.xlu0
    %v1012 = vpop.trf.xlu0
    %v1013 = vpop.trf.xlu0
    %v1014 = vpop.trf.xlu0
    %v1015 = vpop.trf.xlu0
    %v1016 = vpop.trf.xlu0
    %v1017 = vpop.trf.xlu0
    %v1018 = vpop.trf.xlu0
    %v1019 = vpop.trf.xlu0
    %v1020 = vpop.trf.xlu0
    %v1021 = vpop.trf.xlu0
    %v1022 = vpop.trf.xlu0
    %v1023 = vpop.trf.xlu0
    %1024 = vxpose.xlu0.b32.start [1/16] %v874, 128
    %1025 = vxpose.xlu0.b32.cont [2/16] %v877, 128
    %1026 = vxpose.xlu0.b32.cont [3/16] 0.0, 128
    %1027 = vxpose.xlu0.b32.cont [4/16] 0.0, 128
    %1028 = vxpose.xlu0.b32.cont [5/16] 0.0, 128
    %1029 = vxpose.xlu0.b32.cont [6/16] 0.0, 128
    %1030 = vxpose.xlu0.b32.cont [7/16] 0.0, 128
    %1031 = vxpose.xlu0.b32.cont [8/16] 0.0, 128
    %1032 = vxpose.xlu0.b32.cont [9/16] 0.0, 128
    %1033 = vxpose.xlu0.b32.cont [10/16] 0.0, 128
    %1034 = vxpose.xlu0.b32.cont [11/16] 0.0, 128
    %1035 = vxpose.xlu0.b32.cont [12/16] 0.0, 128
    %1036 = vxpose.xlu0.b32.cont [13/16] 0.0, 128
    %1037 = vxpose.xlu0.b32.cont [14/16] 0.0, 128
    %1038 = vxpose.xlu0.b32.cont [15/16] 0.0, 128
    %1039 = vxpose.xlu0.b32.end [16/16] 0.0, 128
    %v1040 = vpop.trf.xlu0
    %v1041 = vpop.trf.xlu0
    %v1042 = vpop.trf.xlu0
    %v1043 = vpop.trf.xlu0
    %v1044 = vpop.trf.xlu0
    %v1045 = vpop.trf.xlu0
    %v1046 = vpop.trf.xlu0
    %v1047 = vpop.trf.xlu0
    %v1048 = vpop.trf.xlu0
    %v1049 = vpop.trf.xlu0
    %v1050 = vpop.trf.xlu0
    %v1051 = vpop.trf.xlu0
    %v1052 = vpop.trf.xlu0
    %v1053 = vpop.trf.xlu0
    %v1054 = vpop.trf.xlu0
    %v1055 = vpop.trf.xlu0
    %1056 = vxpose.xlu0.b32.start [1/16] %v880, 128
    %1057 = vxpose.xlu0.b32.cont [2/16] %v883, 128
    %1058 = vxpose.xlu0.b32.cont [3/16] 0.0, 128
    %1059 = vxpose.xlu0.b32.cont [4/16] 0.0, 128
    %1060 = vxpose.xlu0.b32.cont [5/16] 0.0, 128
    %1061 = vxpose.xlu0.b32.cont [6/16] 0.0, 128
    %1062 = vxpose.xlu0.b32.cont [7/16] 0.0, 128
    %1063 = vxpose.xlu0.b32.cont [8/16] 0.0, 128
    %1064 = vxpose.xlu0.b32.cont [9/16] 0.0, 128
    %1065 = vxpose.xlu0.b32.cont [10/16] 0.0, 128
    %1066 = vxpose.xlu0.b32.cont [11/16] 0.0, 128
    %1067 = vxpose.xlu0.b32.cont [12/16] 0.0, 128
    %1068 = vxpose.xlu0.b32.cont [13/16] 0.0, 128
    %1069 = vxpose.xlu0.b32.cont [14/16] 0.0, 128
    %1070 = vxpose.xlu0.b32.cont [15/16] 0.0, 128
    %1071 = vxpose.xlu0.b32.end [16/16] 0.0, 128
    %v1072 = vpop.trf.xlu0
    %v1073 = vpop.trf.xlu0
    %v1074 = vpop.trf.xlu0
    %v1075 = vpop.trf.xlu0
    %v1076 = vpop.trf.xlu0
    %v1077 = vpop.trf.xlu0
    %v1078 = vpop.trf.xlu0
    %v1079 = vpop.trf.xlu0
    %v1080 = vpop.trf.xlu0
    %v1081 = vpop.trf.xlu0
    %v1082 = vpop.trf.xlu0
    %v1083 = vpop.trf.xlu0
    %v1084 = vpop.trf.xlu0
    %v1085 = vpop.trf.xlu0
    %v1086 = vpop.trf.xlu0
    %v1087 = vpop.trf.xlu0
    %1088 = vxpose.xlu0.b32.start [1/16] %v886, 128
    %1089 = vxpose.xlu0.b32.cont [2/16] %v889, 128
    %1090 = vxpose.xlu0.b32.cont [3/16] 0.0, 128
    %1091 = vxpose.xlu0.b32.cont [4/16] 0.0, 128
    %1092 = vxpose.xlu0.b32.cont [5/16] 0.0, 128
    %1093 = vxpose.xlu0.b32.cont [6/16] 0.0, 128
    %1094 = vxpose.xlu0.b32.cont [7/16] 0.0, 128
    %1095 = vxpose.xlu0.b32.cont [8/16] 0.0, 128
    %1096 = vxpose.xlu0.b32.cont [9/16] 0.0, 128
    %1097 = vxpose.xlu0.b32.cont [10/16] 0.0, 128
    %1098 = vxpose.xlu0.b32.cont [11/16] 0.0, 128
    %1099 = vxpose.xlu0.b32.cont [12/16] 0.0, 128
    %1100 = vxpose.xlu0.b32.cont [13/16] 0.0, 128
    %1101 = vxpose.xlu0.b32.cont [14/16] 0.0, 128
    %1102 = vxpose.xlu0.b32.cont [15/16] 0.0, 128
    %1103 = vxpose.xlu0.b32.end [16/16] 0.0, 128
    %v1104 = vpop.trf.xlu0
    %v1105 = vpop.trf.xlu0
    %v1106 = vpop.trf.xlu0
    %v1107 = vpop.trf.xlu0
    %v1108 = vpop.trf.xlu0
    %v1109 = vpop.trf.xlu0
    %v1110 = vpop.trf.xlu0
    %v1111 = vpop.trf.xlu0
    %v1112 = vpop.trf.xlu0
    %v1113 = vpop.trf.xlu0
    %v1114 = vpop.trf.xlu0
    %v1115 = vpop.trf.xlu0
    %v1116 = vpop.trf.xlu0
    %v1117 = vpop.trf.xlu0
    %v1118 = vpop.trf.xlu0
    %v1119 = vpop.trf.xlu0
    %1120 = vxpose.xlu0.b32.start [1/16] %v892, 128
    %1121 = vxpose.xlu0.b32.cont [2/16] %v895, 128
    %1122 = vxpose.xlu0.b32.cont [3/16] 0.0, 128
    %1123 = vxpose.xlu0.b32.cont [4/16] 0.0, 128
    %1124 = vxpose.xlu0.b32.cont [5/16] 0.0, 128
    %1125 = vxpose.xlu0.b32.cont [6/16] 0.0, 128
    %1126 = vxpose.xlu0.b32.cont [7/16] 0.0, 128
    %1127 = vxpose.xlu0.b32.cont [8/16] 0.0, 128
    %1128 = vxpose.xlu0.b32.cont [9/16] 0.0, 128
    %1129 = vxpose.xlu0.b32.cont [10/16] 0.0, 128
    %1130 = vxpose.xlu0.b32.cont [11/16] 0.0, 128
    %1131 = vxpose.xlu0.b32.cont [12/16] 0.0, 128
    %1132 = vxpose.xlu0.b32.cont [13/16] 0.0, 128
    %1133 = vxpose.xlu0.b32.cont [14/16] 0.0, 128
    %1134 = vxpose.xlu0.b32.cont [15/16] 0.0, 128
    %1135 = vxpose.xlu0.b32.end [16/16] 0.0, 128
    %v1136 = vpop.trf.xlu0
    %v1137 = vpop.trf.xlu0
    %v1138 = vpop.trf.xlu0
    %v1139 = vpop.trf.xlu0
    %v1140 = vpop.trf.xlu0
    %v1141 = vpop.trf.xlu0
    %v1142 = vpop.trf.xlu0
    %v1143 = vpop.trf.xlu0
    %v1144 = vpop.trf.xlu0
    %v1145 = vpop.trf.xlu0
    %v1146 = vpop.trf.xlu0
    %v1147 = vpop.trf.xlu0
    %v1148 = vpop.trf.xlu0
    %v1149 = vpop.trf.xlu0
    %v1150 = vpop.trf.xlu0
    %v1151 = vpop.trf.xlu0
    %v1152 = vlaneseq
    %v1153 = vshrl.u32 %v1152, 7
    %v1154 = vsub.s32 0, %v1153
    %v1155 = vrot.slane %v912, %v1154
    %v1156 = vlaneseq
    %v1157 = vshrl.u32 %v1156, 7
    %v1158 = vsub.s32 0, %v1157
    %v1159 = vrot.slane %v944, %v1158
    %v1160 = vlaneseq
    %v1161 = vshrl.u32 %v1160, 7
    %v1162 = vsub.s32 0, %v1161
    %v1163 = vrot.slane %v976, %v1162
    %v1164 = vlaneseq
    %v1165 = vshrl.u32 %v1164, 7
    %v1166 = vsub.s32 0, %v1165
    %v1167 = vrot.slane %v1008, %v1166
    %v1168 = vlaneseq
    %v1169 = vshrl.u32 %v1168, 7
    %v1170 = vsub.s32 0, %v1169
    %v1171 = vrot.slane %v1040, %v1170
    %v1172 = vlaneseq
    %v1173 = vshrl.u32 %v1172, 7
    %v1174 = vsub.s32 0, %v1173
    %v1175 = vrot.slane %v1072, %v1174
    %v1176 = vlaneseq
    %v1177 = vshrl.u32 %v1176, 7
    %v1178 = vsub.s32 0, %v1177
    %v1179 = vrot.slane %v1104, %v1178
    %v1180 = vlaneseq
    %v1181 = vshrl.u32 %v1180, 7
    %v1182 = vsub.s32 0, %v1181
    %v1183 = vrot.slane %v1136, %v1182
    %v1184 = vadd.f32 %v786, %v1155
    %v1185 = vadd.f32 %v789, %v1155
    %v1186 = vadd.f32 %v792, %v1159
    %v1187 = vadd.f32 %v795, %v1159
    %v1188 = vadd.f32 %v798, %v1163
    %v1189 = vadd.f32 %v801, %v1163
    %v1190 = vadd.f32 %v804, %v1167
    %v1191 = vadd.f32 %v807, %v1167
    %v1192 = vadd.f32 %v810, %v1171
    %v1193 = vadd.f32 %v813, %v1171
    %v1194 = vadd.f32 %v816, %v1175
    %v1195 = vadd.f32 %v819, %v1175
    %v1196 = vadd.f32 %v822, %v1179
    %v1197 = vadd.f32 %v825, %v1179
    %v1198 = vadd.f32 %v828, %v1183
    %v1199 = vadd.f32 %v831, %v1183
    %v1200 = vmul.f32 %v151, 2.0
    %v1201 = vmul.f32 %v156, 2.0
    %v1202 = vmul.f32 %v238, 2.0
    %v1203 = vmul.f32 %v243, 2.0
    %v1204 = vmul.f32 %v325, 2.0
    %v1205 = vmul.f32 %v330, 2.0
    %v1206 = vmul.f32 %v412, 2.0
    %v1207 = vmul.f32 %v417, 2.0
    %v1208 = vmul.f32 %v499, 2.0
    %v1209 = vmul.f32 %v504, 2.0
    %v1210 = vmul.f32 %v586, 2.0
    %v1211 = vmul.f32 %v591, 2.0
    %v1212 = vmul.f32 %v673, 2.0
    %v1213 = vmul.f32 %v678, 2.0
    %v1214 = vmul.f32 %v760, 2.0
    %v1215 = vmul.f32 %v765, 2.0
    %v1216 = vsub.f32 %v1184, %v1200
    %v1217 = vsub.f32 %v1185, %v1201
    %v1218 = vsub.f32 %v1186, %v1202
    %v1219 = vsub.f32 %v1187, %v1203
    %v1220 = vsub.f32 %v1188, %v1204
    %v1221 = vsub.f32 %v1189, %v1205
    %v1222 = vsub.f32 %v1190, %v1206
    %v1223 = vsub.f32 %v1191, %v1207
    %v1224 = vsub.f32 %v1192, %v1208
    %v1225 = vsub.f32 %v1193, %v1209
    %v1226 = vsub.f32 %v1194, %v1210
    %v1227 = vsub.f32 %v1195, %v1211
    %v1228 = vsub.f32 %v1196, %v1212
    %v1229 = vsub.f32 %v1197, %v1213
    %v1230 = vsub.f32 %v1198, %v1214
    %v1231 = vsub.f32 %v1199, %v1215
    %v1232 = vmax.f32 %v1216, 0.0
    %v1233 = vmax.f32 %v1217, 0.0
    %v1234 = vmax.f32 %v1218, 0.0
    %v1235 = vmax.f32 %v1219, 0.0
    %v1236 = vmax.f32 %v1220, 0.0
    %v1237 = vmax.f32 %v1221, 0.0
    %v1238 = vmax.f32 %v1222, 0.0
    %v1239 = vmax.f32 %v1223, 0.0
    %v1240 = vmax.f32 %v1224, 0.0
    %v1241 = vmax.f32 %v1225, 0.0
    %v1242 = vmax.f32 %v1226, 0.0
    %v1243 = vmax.f32 %v1227, 0.0
    %v1244 = vmax.f32 %v1228, 0.0
    %v1245 = vmax.f32 %v1229, 0.0
    %v1246 = vmax.f32 %v1230, 0.0
    %v1247 = vmax.f32 %v1231, 0.0
    %v1248 = vmul.f32 %v1232, -100.0
    %v1249 = vmul.f32 %v1233, -100.0
    %v1250 = vmul.f32 %v1234, -100.0
    %v1251 = vmul.f32 %v1235, -100.0
    %v1252 = vmul.f32 %v1236, -100.0
    %v1253 = vmul.f32 %v1237, -100.0
    %v1254 = vmul.f32 %v1238, -100.0
    %v1255 = vmul.f32 %v1239, -100.0
    %v1256 = vmul.f32 %v1240, -100.0
    %v1257 = vmul.f32 %v1241, -100.0
    %v1258 = vmul.f32 %v1242, -100.0
    %v1259 = vmul.f32 %v1243, -100.0
    %v1260 = vmul.f32 %v1244, -100.0
    %v1261 = vmul.f32 %v1245, -100.0
    %v1262 = vmul.f32 %v1246, -100.0
    %v1263 = vmul.f32 %v1247, -100.0
    %v1264 = vsel %vm71, %v1248, -inf
    %1265 = vmax.xlane.f32.xlu0 %v1264
    %v1266 = vpop.xlane.xlu0 %1265
    %v1267 = vsel %vm71, %v1249, -inf
    %1268 = vmax.xlane.f32.xlu0 %v1267
    %v1269 = vpop.xlane.xlu0 %1268
    %v1270 = vsel %vm71, %v1250, -inf
    %1271 = vmax.xlane.f32.xlu0 %v1270
    %v1272 = vpop.xlane.xlu0 %1271
    %v1273 = vsel %vm71, %v1251, -inf
    %1274 = vmax.xlane.f32.xlu0 %v1273
    %v1275 = vpop.xlane.xlu0 %1274
    %v1276 = vsel %vm71, %v1252, -inf
    %1277 = vmax.xlane.f32.xlu0 %v1276
    %v1278 = vpop.xlane.xlu0 %1277
    %v1279 = vsel %vm71, %v1253, -inf
    %1280 = vmax.xlane.f32.xlu0 %v1279
    %v1281 = vpop.xlane.xlu0 %1280
    %v1282 = vsel %vm71, %v1254, -inf
    %1283 = vmax.xlane.f32.xlu0 %v1282
    %v1284 = vpop.xlane.xlu0 %1283
    %v1285 = vsel %vm71, %v1255, -inf
    %1286 = vmax.xlane.f32.xlu0 %v1285
    %v1287 = vpop.xlane.xlu0 %1286
    %v1288 = vsel %vm71, %v1256, -inf
    %1289 = vmax.xlane.f32.xlu0 %v1288
    %v1290 = vpop.xlane.xlu0 %1289
    %v1291 = vsel %vm71, %v1257, -inf
    %1292 = vmax.xlane.f32.xlu0 %v1291
    %v1293 = vpop.xlane.xlu0 %1292
    %v1294 = vsel %vm71, %v1258, -inf
    %1295 = vmax.xlane.f32.xlu0 %v1294
    %v1296 = vpop.xlane.xlu0 %1295
    %v1297 = vsel %vm71, %v1259, -inf
    %1298 = vmax.xlane.f32.xlu0 %v1297
    %v1299 = vpop.xlane.xlu0 %1298
    %v1300 = vsel %vm71, %v1260, -inf
    %1301 = vmax.xlane.f32.xlu0 %v1300
    %v1302 = vpop.xlane.xlu0 %1301
    %v1303 = vsel %vm71, %v1261, -inf
    %1304 = vmax.xlane.f32.xlu0 %v1303
    %v1305 = vpop.xlane.xlu0 %1304
    %v1306 = vsel %vm71, %v1262, -inf
    %1307 = vmax.xlane.f32.xlu0 %v1306
    %v1308 = vpop.xlane.xlu0 %1307
    %v1309 = vsel %vm71, %v1263, -inf
    %1310 = vmax.xlane.f32.xlu0 %v1309
    %v1311 = vpop.xlane.xlu0 %1310
    %v1312 = vsub.f32 %v1248, %v1266
    %v1313 = vsub.f32 %v1249, %v1269
    %v1314 = vsub.f32 %v1250, %v1272
    %v1315 = vsub.f32 %v1251, %v1275
    %v1316 = vsub.f32 %v1252, %v1278
    %v1317 = vsub.f32 %v1253, %v1281
    %v1318 = vsub.f32 %v1254, %v1284
    %v1319 = vsub.f32 %v1255, %v1287
    %v1320 = vsub.f32 %v1256, %v1290
    %v1321 = vsub.f32 %v1257, %v1293
    %v1322 = vsub.f32 %v1258, %v1296
    %v1323 = vsub.f32 %v1259, %v1299
    %v1324 = vsub.f32 %v1260, %v1302
    %v1325 = vsub.f32 %v1261, %v1305
    %v1326 = vsub.f32 %v1262, %v1308
    %v1327 = vsub.f32 %v1263, %v1311
    %v1328 = vmul.f32 %v1312, 1.442695
    %v1329 = vpow.pop %v1328
    %v1330 = vmul.f32 %v1313, 1.442695
    %v1331 = vpow.pop %v1330
    %v1332 = vmul.f32 %v1314, 1.442695
    %v1333 = vpow.pop %v1332
    %v1334 = vmul.f32 %v1315, 1.442695
    %v1335 = vpow.pop %v1334
    %v1336 = vmul.f32 %v1316, 1.442695
    %v1337 = vpow.pop %v1336
    %v1338 = vmul.f32 %v1317, 1.442695
    %v1339 = vpow.pop %v1338
    %v1340 = vmul.f32 %v1318, 1.442695
    %v1341 = vpow.pop %v1340
    %v1342 = vmul.f32 %v1319, 1.442695
    %v1343 = vpow.pop %v1342
    %v1344 = vmul.f32 %v1320, 1.442695
    %v1345 = vpow.pop %v1344
    %v1346 = vmul.f32 %v1321, 1.442695
    %v1347 = vpow.pop %v1346
    %v1348 = vmul.f32 %v1322, 1.442695
    %v1349 = vpow.pop %v1348
    %v1350 = vmul.f32 %v1323, 1.442695
    %v1351 = vpow.pop %v1350
    %v1352 = vmul.f32 %v1324, 1.442695
    %v1353 = vpow.pop %v1352
    %v1354 = vmul.f32 %v1325, 1.442695
    %v1355 = vpow.pop %v1354
    %v1356 = vmul.f32 %v1326, 1.442695
    %v1357 = vpow.pop %v1356
    %v1358 = vmul.f32 %v1327, 1.442695
    %v1359 = vpow.pop %v1358
    %v1360 = vsel %vm71, %v1329, 0.0
    %1361 = vadd.xlane.f32.xlu0 %v1360
    %v1362 = vpop.xlane.xlu0 %1361
    %v1363 = vsel %vm71, %v1331, 0.0
    %1364 = vadd.xlane.f32.xlu0 %v1363
    %v1365 = vpop.xlane.xlu0 %1364
    %v1366 = vsel %vm71, %v1333, 0.0
    %1367 = vadd.xlane.f32.xlu0 %v1366
    %v1368 = vpop.xlane.xlu0 %1367
    %v1369 = vsel %vm71, %v1335, 0.0
    %1370 = vadd.xlane.f32.xlu0 %v1369
    %v1371 = vpop.xlane.xlu0 %1370
    %v1372 = vsel %vm71, %v1337, 0.0
    %1373 = vadd.xlane.f32.xlu0 %v1372
    %v1374 = vpop.xlane.xlu0 %1373
    %v1375 = vsel %vm71, %v1339, 0.0
    %1376 = vadd.xlane.f32.xlu0 %v1375
    %v1377 = vpop.xlane.xlu0 %1376
    %v1378 = vsel %vm71, %v1341, 0.0
    %1379 = vadd.xlane.f32.xlu0 %v1378
    %v1380 = vpop.xlane.xlu0 %1379
    %v1381 = vsel %vm71, %v1343, 0.0
    %1382 = vadd.xlane.f32.xlu0 %v1381
    %v1383 = vpop.xlane.xlu0 %1382
    %v1384 = vsel %vm71, %v1345, 0.0
    %1385 = vadd.xlane.f32.xlu0 %v1384
    %v1386 = vpop.xlane.xlu0 %1385
    %v1387 = vsel %vm71, %v1347, 0.0
    %1388 = vadd.xlane.f32.xlu0 %v1387
    %v1389 = vpop.xlane.xlu0 %1388
    %v1390 = vsel %vm71, %v1349, 0.0
    %1391 = vadd.xlane.f32.xlu0 %v1390
    %v1392 = vpop.xlane.xlu0 %1391
    %v1393 = vsel %vm71, %v1351, 0.0
    %1394 = vadd.xlane.f32.xlu0 %v1393
    %v1395 = vpop.xlane.xlu0 %1394
    %v1396 = vsel %vm71, %v1353, 0.0
    %1397 = vadd.xlane.f32.xlu0 %v1396
    %v1398 = vpop.xlane.xlu0 %1397
    %v1399 = vsel %vm71, %v1355, 0.0
    %1400 = vadd.xlane.f32.xlu0 %v1399
    %v1401 = vpop.xlane.xlu0 %1400
    %v1402 = vsel %vm71, %v1357, 0.0
    %1403 = vadd.xlane.f32.xlu0 %v1402
    %v1404 = vpop.xlane.xlu0 %1403
    %v1405 = vsel %vm71, %v1359, 0.0
    %1406 = vadd.xlane.f32.xlu0 %v1405
    %v1407 = vpop.xlane.xlu0 %1406
    %v1408 = vlog2.pop %v1362
    %v1409 = vmul.f32 %v1408, 0.6931472
    %v1410 = vlog2.pop %v1365
    %v1411 = vmul.f32 %v1410, 0.6931472
    %v1412 = vlog2.pop %v1368
    %v1413 = vmul.f32 %v1412, 0.6931472
    %v1414 = vlog2.pop %v1371
    %v1415 = vmul.f32 %v1414, 0.6931472
    %v1416 = vlog2.pop %v1374
    %v1417 = vmul.f32 %v1416, 0.6931472
    %v1418 = vlog2.pop %v1377
    %v1419 = vmul.f32 %v1418, 0.6931472
    %v1420 = vlog2.pop %v1380
    %v1421 = vmul.f32 %v1420, 0.6931472
    %v1422 = vlog2.pop %v1383
    %v1423 = vmul.f32 %v1422, 0.6931472
    %v1424 = vlog2.pop %v1386
    %v1425 = vmul.f32 %v1424, 0.6931472
    %v1426 = vlog2.pop %v1389
    %v1427 = vmul.f32 %v1426, 0.6931472
    %v1428 = vlog2.pop %v1392
    %v1429 = vmul.f32 %v1428, 0.6931472
    %v1430 = vlog2.pop %v1395
    %v1431 = vmul.f32 %v1430, 0.6931472
    %v1432 = vlog2.pop %v1398
    %v1433 = vmul.f32 %v1432, 0.6931472
    %v1434 = vlog2.pop %v1401
    %v1435 = vmul.f32 %v1434, 0.6931472
    %v1436 = vlog2.pop %v1404
    %v1437 = vmul.f32 %v1436, 0.6931472
    %v1438 = vlog2.pop %v1407
    %v1439 = vmul.f32 %v1438, 0.6931472
    %v1440 = vadd.f32 %v1409, %v1266
    %v1441 = vadd.f32 %v1411, %v1269
    %v1442 = vadd.f32 %v1413, %v1272
    %v1443 = vadd.f32 %v1415, %v1275
    %v1444 = vadd.f32 %v1417, %v1278
    %v1445 = vadd.f32 %v1419, %v1281
    %v1446 = vadd.f32 %v1421, %v1284
    %v1447 = vadd.f32 %v1423, %v1287
    %v1448 = vadd.f32 %v1425, %v1290
    %v1449 = vadd.f32 %v1427, %v1293
    %v1450 = vadd.f32 %v1429, %v1296
    %v1451 = vadd.f32 %v1431, %v1299
    %v1452 = vadd.f32 %v1433, %v1302
    %v1453 = vadd.f32 %v1435, %v1305
    %v1454 = vadd.f32 %v1437, %v1308
    %v1455 = vadd.f32 %v1439, %v1311
    %v1456 = vsub.f32 -2.7725885, %v1440
    %v1457 = vsub.f32 -2.7725885, %v1441
    %v1458 = vsub.f32 -2.7725885, %v1442
    %v1459 = vsub.f32 -2.7725885, %v1443
    %v1460 = vsub.f32 -2.7725885, %v1444
    %v1461 = vsub.f32 -2.7725885, %v1445
    %v1462 = vsub.f32 -2.7725885, %v1446
    %v1463 = vsub.f32 -2.7725885, %v1447
    %v1464 = vsub.f32 -2.7725885, %v1448
    %v1465 = vsub.f32 -2.7725885, %v1449
    %v1466 = vsub.f32 -2.7725885, %v1450
    %v1467 = vsub.f32 -2.7725885, %v1451
    %v1468 = vsub.f32 -2.7725885, %v1452
    %v1469 = vsub.f32 -2.7725885, %v1453
    %v1470 = vsub.f32 -2.7725885, %v1454
    %v1471 = vsub.f32 -2.7725885, %v1455
    %v1472 = vadd.f32 %v1248, %v1456
    %v1473 = vadd.f32 %v1249, %v1457
    %v1474 = vadd.f32 %v1250, %v1458
    %v1475 = vadd.f32 %v1251, %v1459
    %v1476 = vadd.f32 %v1252, %v1460
    %v1477 = vadd.f32 %v1253, %v1461
    %v1478 = vadd.f32 %v1254, %v1462
    %v1479 = vadd.f32 %v1255, %v1463
    %v1480 = vadd.f32 %v1256, %v1464
    %v1481 = vadd.f32 %v1257, %v1465
    %v1482 = vadd.f32 %v1258, %v1466
    %v1483 = vadd.f32 %v1259, %v1467
    %v1484 = vadd.f32 %v1260, %v1468
    %v1485 = vadd.f32 %v1261, %v1469
    %v1486 = vadd.f32 %v1262, %v1470
    %v1487 = vadd.f32 %v1263, %v1471
    %v1488 = vsel %vm71, %v1472, -inf
    %v1489 = vsel %vm71, %v1473, -inf
    %v1490 = vmax.f32 %v1488, %v1489
    %v1491 = vrot.slane %v1490, 4
    %v1492 = vmax.f32 %v1490, %v1491
    %v1493 = vrot.slane %v1492, 2
    %v1494 = vmax.f32 %v1492, %v1493
    %v1495 = vrot.slane %v1494, 1
    %v1496 = vmax.f32 %v1494, %v1495
    %v1497 = vsel %vm71, %v1474, -inf
    %v1498 = vsel %vm71, %v1475, -inf
    %v1499 = vmax.f32 %v1497, %v1498
    %v1500 = vrot.slane %v1499, 4
    %v1501 = vmax.f32 %v1499, %v1500
    %v1502 = vrot.slane %v1501, 2
    %v1503 = vmax.f32 %v1501, %v1502
    %v1504 = vrot.slane %v1503, 1
    %v1505 = vmax.f32 %v1503, %v1504
    %v1506 = vsel %vm71, %v1476, -inf
    %v1507 = vsel %vm71, %v1477, -inf
    %v1508 = vmax.f32 %v1506, %v1507
    %v1509 = vrot.slane %v1508, 4
    %v1510 = vmax.f32 %v1508, %v1509
    %v1511 = vrot.slane %v1510, 2
    %v1512 = vmax.f32 %v1510, %v1511
    %v1513 = vrot.slane %v1512, 1
    %v1514 = vmax.f32 %v1512, %v1513
    %v1515 = vsel %vm71, %v1478, -inf
    %v1516 = vsel %vm71, %v1479, -inf
    %v1517 = vmax.f32 %v1515, %v1516
    %v1518 = vrot.slane %v1517, 4
    %v1519 = vmax.f32 %v1517, %v1518
    %v1520 = vrot.slane %v1519, 2
    %v1521 = vmax.f32 %v1519, %v1520
    %v1522 = vrot.slane %v1521, 1
    %v1523 = vmax.f32 %v1521, %v1522
    %v1524 = vsel %vm71, %v1480, -inf
    %v1525 = vsel %vm71, %v1481, -inf
    %v1526 = vmax.f32 %v1524, %v1525
    %v1527 = vrot.slane %v1526, 4
    %v1528 = vmax.f32 %v1526, %v1527
    %v1529 = vrot.slane %v1528, 2
    %v1530 = vmax.f32 %v1528, %v1529
    %v1531 = vrot.slane %v1530, 1
    %v1532 = vmax.f32 %v1530, %v1531
    %v1533 = vsel %vm71, %v1482, -inf
    %v1534 = vsel %vm71, %v1483, -inf
    %v1535 = vmax.f32 %v1533, %v1534
    %v1536 = vrot.slane %v1535, 4
    %v1537 = vmax.f32 %v1535, %v1536
    %v1538 = vrot.slane %v1537, 2
    %v1539 = vmax.f32 %v1537, %v1538
    %v1540 = vrot.slane %v1539, 1
    %v1541 = vmax.f32 %v1539, %v1540
    %v1542 = vsel %vm71, %v1484, -inf
    %v1543 = vsel %vm71, %v1485, -inf
    %v1544 = vmax.f32 %v1542, %v1543
    %v1545 = vrot.slane %v1544, 4
    %v1546 = vmax.f32 %v1544, %v1545
    %v1547 = vrot.slane %v1546, 2
    %v1548 = vmax.f32 %v1546, %v1547
    %v1549 = vrot.slane %v1548, 1
    %v1550 = vmax.f32 %v1548, %v1549
    %v1551 = vsel %vm71, %v1486, -inf
    %v1552 = vsel %vm71, %v1487, -inf
    %v1553 = vmax.f32 %v1551, %v1552
    %v1554 = vrot.slane %v1553, 4
    %v1555 = vmax.f32 %v1553, %v1554
    %v1556 = vrot.slane %v1555, 2
    %v1557 = vmax.f32 %v1555, %v1556
    %v1558 = vrot.slane %v1557, 1
    %v1559 = vmax.f32 %v1557, %v1558
    %v1560 = vsub.f32 %v1472, %v1496
    %v1561 = vsub.f32 %v1473, %v1496
    %v1562 = vsub.f32 %v1474, %v1505
    %v1563 = vsub.f32 %v1475, %v1505
    %v1564 = vsub.f32 %v1476, %v1514
    %v1565 = vsub.f32 %v1477, %v1514
    %v1566 = vsub.f32 %v1478, %v1523
    %v1567 = vsub.f32 %v1479, %v1523
    %v1568 = vsub.f32 %v1480, %v1532
    %v1569 = vsub.f32 %v1481, %v1532
    %v1570 = vsub.f32 %v1482, %v1541
    %v1571 = vsub.f32 %v1483, %v1541
    %v1572 = vsub.f32 %v1484, %v1550
    %v1573 = vsub.f32 %v1485, %v1550
    %v1574 = vsub.f32 %v1486, %v1559
    %v1575 = vsub.f32 %v1487, %v1559
    %v1576 = vmul.f32 %v1560, 1.442695
    %v1577 = vpow.pop %v1576
    %v1578 = vmul.f32 %v1561, 1.442695
    %v1579 = vpow.pop %v1578
    %v1580 = vmul.f32 %v1562, 1.442695
    %v1581 = vpow.pop %v1580
    %v1582 = vmul.f32 %v1563, 1.442695
    %v1583 = vpow.pop %v1582
    %v1584 = vmul.f32 %v1564, 1.442695
    %v1585 = vpow.pop %v1584
    %v1586 = vmul.f32 %v1565, 1.442695
    %v1587 = vpow.pop %v1586
    %v1588 = vmul.f32 %v1566, 1.442695
    %v1589 = vpow.pop %v1588
    %v1590 = vmul.f32 %v1567, 1.442695
    %v1591 = vpow.pop %v1590
    %v1592 = vmul.f32 %v1568, 1.442695
    %v1593 = vpow.pop %v1592
    %v1594 = vmul.f32 %v1569, 1.442695
    %v1595 = vpow.pop %v1594
    %v1596 = vmul.f32 %v1570, 1.442695
    %v1597 = vpow.pop %v1596
    %v1598 = vmul.f32 %v1571, 1.442695
    %v1599 = vpow.pop %v1598
    %v1600 = vmul.f32 %v1572, 1.442695
    %v1601 = vpow.pop %v1600
    %v1602 = vmul.f32 %v1573, 1.442695
    %v1603 = vpow.pop %v1602
    %v1604 = vmul.f32 %v1574, 1.442695
    %v1605 = vpow.pop %v1604
    %v1606 = vmul.f32 %v1575, 1.442695
    %v1607 = vpow.pop %v1606
    %v1608 = vsel %vm71, %v1577, 0.0
    %v1609 = vsel %vm71, %v1579, 0.0
    %v1610 = vadd.f32 %v1608, %v1609
    %v1611 = vrot.slane %v1610, 4
    %v1612 = vadd.f32 %v1610, %v1611
    %v1613 = vrot.slane %v1612, 2
    %v1614 = vadd.f32 %v1612, %v1613
    %v1615 = vrot.slane %v1614, 1
    %v1616 = vadd.f32 %v1614, %v1615
    %v1617 = vsel %vm71, %v1581, 0.0
    %v1618 = vsel %vm71, %v1583, 0.0
    %v1619 = vadd.f32 %v1617, %v1618
    %v1620 = vrot.slane %v1619, 4
    %v1621 = vadd.f32 %v1619, %v1620
    %v1622 = vrot.slane %v1621, 2
    %v1623 = vadd.f32 %v1621, %v1622
    %v1624 = vrot.slane %v1623, 1
    %v1625 = vadd.f32 %v1623, %v1624
    %v1626 = vsel %vm71, %v1585, 0.0
    %v1627 = vsel %vm71, %v1587, 0.0
    %v1628 = vadd.f32 %v1626, %v1627
    %v1629 = vrot.slane %v1628, 4
    %v1630 = vadd.f32 %v1628, %v1629
    %v1631 = vrot.slane %v1630, 2
    %v1632 = vadd.f32 %v1630, %v1631
    %v1633 = vrot.slane %v1632, 1
    %v1634 = vadd.f32 %v1632, %v1633
    %v1635 = vsel %vm71, %v1589, 0.0
    %v1636 = vsel %vm71, %v1591, 0.0
    %v1637 = vadd.f32 %v1635, %v1636
    %v1638 = vrot.slane %v1637, 4
    %v1639 = vadd.f32 %v1637, %v1638
    %v1640 = vrot.slane %v1639, 2
    %v1641 = vadd.f32 %v1639, %v1640
    %v1642 = vrot.slane %v1641, 1
    %v1643 = vadd.f32 %v1641, %v1642
    %v1644 = vsel %vm71, %v1593, 0.0
    %v1645 = vsel %vm71, %v1595, 0.0
    %v1646 = vadd.f32 %v1644, %v1645
    %v1647 = vrot.slane %v1646, 4
    %v1648 = vadd.f32 %v1646, %v1647
    %v1649 = vrot.slane %v1648, 2
    %v1650 = vadd.f32 %v1648, %v1649
    %v1651 = vrot.slane %v1650, 1
    %v1652 = vadd.f32 %v1650, %v1651
    %v1653 = vsel %vm71, %v1597, 0.0
    %v1654 = vsel %vm71, %v1599, 0.0
    %v1655 = vadd.f32 %v1653, %v1654
    %v1656 = vrot.slane %v1655, 4
    %v1657 = vadd.f32 %v1655, %v1656
    %v1658 = vrot.slane %v1657, 2
    %v1659 = vadd.f32 %v1657, %v1658
    %v1660 = vrot.slane %v1659, 1
    %v1661 = vadd.f32 %v1659, %v1660
    %v1662 = vsel %vm71, %v1601, 0.0
    %v1663 = vsel %vm71, %v1603, 0.0
    %v1664 = vadd.f32 %v1662, %v1663
    %v1665 = vrot.slane %v1664, 4
    %v1666 = vadd.f32 %v1664, %v1665
    %v1667 = vrot.slane %v1666, 2
    %v1668 = vadd.f32 %v1666, %v1667
    %v1669 = vrot.slane %v1668, 1
    %v1670 = vadd.f32 %v1668, %v1669
    %v1671 = vsel %vm71, %v1605, 0.0
    %v1672 = vsel %vm71, %v1607, 0.0
    %v1673 = vadd.f32 %v1671, %v1672
    %v1674 = vrot.slane %v1673, 4
    %v1675 = vadd.f32 %v1673, %v1674
    %v1676 = vrot.slane %v1675, 2
    %v1677 = vadd.f32 %v1675, %v1676
    %v1678 = vrot.slane %v1677, 1
    %v1679 = vadd.f32 %v1677, %v1678
    %v1680 = vlog2.pop %v1616
    %v1681 = vmul.f32 %v1680, 0.6931472
    %v1682 = vlog2.pop %v1625
    %v1683 = vmul.f32 %v1682, 0.6931472
    %v1684 = vlog2.pop %v1634
    %v1685 = vmul.f32 %v1684, 0.6931472
    %v1686 = vlog2.pop %v1643
    %v1687 = vmul.f32 %v1686, 0.6931472
    %v1688 = vlog2.pop %v1652
    %v1689 = vmul.f32 %v1688, 0.6931472
    %v1690 = vlog2.pop %v1661
    %v1691 = vmul.f32 %v1690, 0.6931472
    %v1692 = vlog2.pop %v1670
    %v1693 = vmul.f32 %v1692, 0.6931472
    %v1694 = vlog2.pop %v1679
    %v1695 = vmul.f32 %v1694, 0.6931472
    %v1696 = vadd.f32 %v1681, %v1496
    %v1697 = vadd.f32 %v1683, %v1505
    %v1698 = vadd.f32 %v1685, %v1514
    %v1699 = vadd.f32 %v1687, %v1523
    %v1700 = vadd.f32 %v1689, %v1532
    %v1701 = vadd.f32 %v1691, %v1541
    %v1702 = vadd.f32 %v1693, %v1550
    %v1703 = vadd.f32 %v1695, %v1559
    %v1704 = vsub.f32 -2.7725885, %v1696
    %v1705 = vsub.f32 -2.7725885, %v1697
    %v1706 = vsub.f32 -2.7725885, %v1698
    %v1707 = vsub.f32 -2.7725885, %v1699
    %v1708 = vsub.f32 -2.7725885, %v1700
    %v1709 = vsub.f32 -2.7725885, %v1701
    %v1710 = vsub.f32 -2.7725885, %v1702
    %v1711 = vsub.f32 -2.7725885, %v1703
    %v1712 = vadd.f32 %v1704, %v1496
    %v1713 = vadd.f32 %v1705, %v1505
    %v1714 = vadd.f32 %v1706, %v1514
    %v1715 = vadd.f32 %v1707, %v1523
    %v1716 = vadd.f32 %v1708, %v1532
    %v1717 = vadd.f32 %v1709, %v1541
    %v1718 = vadd.f32 %v1710, %v1550
    %v1719 = vadd.f32 %v1711, %v1559
    %v1720 = vmul.f32 %v1712, 1.442695
    %v1721 = vpow.pop %v1720
    %v1722 = vmul.f32 %v1713, 1.442695
    %v1723 = vpow.pop %v1722
    %v1724 = vmul.f32 %v1714, 1.442695
    %v1725 = vpow.pop %v1724
    %v1726 = vmul.f32 %v1715, 1.442695
    %v1727 = vpow.pop %v1726
    %v1728 = vmul.f32 %v1716, 1.442695
    %v1729 = vpow.pop %v1728
    %v1730 = vmul.f32 %v1717, 1.442695
    %v1731 = vpow.pop %v1730
    %v1732 = vmul.f32 %v1718, 1.442695
    %v1733 = vpow.pop %v1732
    %v1734 = vmul.f32 %v1719, 1.442695
    %v1735 = vpow.pop %v1734
    %v1736 = vmul.f32 %v1577, %v1721
    %v1737 = vmul.f32 %v1579, %v1721
    %v1738 = vmul.f32 %v1581, %v1723
    %v1739 = vmul.f32 %v1583, %v1723
    %v1740 = vmul.f32 %v1585, %v1725
    %v1741 = vmul.f32 %v1587, %v1725
    %v1742 = vmul.f32 %v1589, %v1727
    %v1743 = vmul.f32 %v1591, %v1727
    %v1744 = vmul.f32 %v1593, %v1729
    %v1745 = vmul.f32 %v1595, %v1729
    %v1746 = vmul.f32 %v1597, %v1731
    %v1747 = vmul.f32 %v1599, %v1731
    %v1748 = vmul.f32 %v1601, %v1733
    %v1749 = vmul.f32 %v1603, %v1733
    %v1750 = vmul.f32 %v1605, %v1735
    %v1751 = vmul.f32 %v1607, %v1735
    %v1752 = vmul.f32 %v1736, %v1232
    %v1753 = vmul.f32 %v1737, %v1233
    %v1754 = vmul.f32 %v1738, %v1234
    %v1755 = vmul.f32 %v1739, %v1235
    %v1756 = vmul.f32 %v1740, %v1236
    %v1757 = vmul.f32 %v1741, %v1237
    %v1758 = vmul.f32 %v1742, %v1238
    %v1759 = vmul.f32 %v1743, %v1239
    %v1760 = vmul.f32 %v1744, %v1240
    %v1761 = vmul.f32 %v1745, %v1241
    %v1762 = vmul.f32 %v1746, %v1242
    %v1763 = vmul.f32 %v1747, %v1243
    %v1764 = vmul.f32 %v1748, %v1244
    %v1765 = vmul.f32 %v1749, %v1245
    %v1766 = vmul.f32 %v1750, %v1246
    %v1767 = vmul.f32 %v1751, %v1247
    %v1768 = vsel %vm71, %v1752, 0.0
    %1769 = vadd.xlane.f32.xlu0 %v1768
    %v1770 = vpop.xlane.xlu0 %1769
    %v1771 = vsel %vm71, %v1753, 0.0
    %1772 = vadd.xlane.f32.xlu0 %v1771
    %v1773 = vpop.xlane.xlu0 %1772
    %v1774 = vsel %vm71, %v1754, 0.0
    %1775 = vadd.xlane.f32.xlu0 %v1774
    %v1776 = vpop.xlane.xlu0 %1775
    %v1777 = vsel %vm71, %v1755, 0.0
    %1778 = vadd.xlane.f32.xlu0 %v1777
    %v1779 = vpop.xlane.xlu0 %1778
    %v1780 = vsel %vm71, %v1756, 0.0
    %1781 = vadd.xlane.f32.xlu0 %v1780
    %v1782 = vpop.xlane.xlu0 %1781
    %v1783 = vsel %vm71, %v1757, 0.0
    %1784 = vadd.xlane.f32.xlu0 %v1783
    %v1785 = vpop.xlane.xlu0 %1784
    %v1786 = vsel %vm71, %v1758, 0.0
    %1787 = vadd.xlane.f32.xlu0 %v1786
    %v1788 = vpop.xlane.xlu0 %1787
    %v1789 = vsel %vm71, %v1759, 0.0
    %1790 = vadd.xlane.f32.xlu0 %v1789
    %v1791 = vpop.xlane.xlu0 %1790
    %v1792 = vsel %vm71, %v1760, 0.0
    %1793 = vadd.xlane.f32.xlu0 %v1792
    %v1794 = vpop.xlane.xlu0 %1793
    %v1795 = vsel %vm71, %v1761, 0.0
    %1796 = vadd.xlane.f32.xlu0 %v1795
    %v1797 = vpop.xlane.xlu0 %1796
    %v1798 = vsel %vm71, %v1762, 0.0
    %1799 = vadd.xlane.f32.xlu0 %v1798
    %v1800 = vpop.xlane.xlu0 %1799
    %v1801 = vsel %vm71, %v1763, 0.0
    %1802 = vadd.xlane.f32.xlu0 %v1801
    %v1803 = vpop.xlane.xlu0 %1802
    %v1804 = vsel %vm71, %v1764, 0.0
    %1805 = vadd.xlane.f32.xlu0 %v1804
    %v1806 = vpop.xlane.xlu0 %1805
    %v1807 = vsel %vm71, %v1765, 0.0
    %1808 = vadd.xlane.f32.xlu0 %v1807
    %v1809 = vpop.xlane.xlu0 %1808
    %v1810 = vsel %vm71, %v1766, 0.0
    %1811 = vadd.xlane.f32.xlu0 %v1810
    %v1812 = vpop.xlane.xlu0 %1811
    %v1813 = vsel %vm71, %v1767, 0.0
    %1814 = vadd.xlane.f32.xlu0 %v1813
    %v1815 = vpop.xlane.xlu0 %1814
    %v1816 = vadd.f32 %v1770, %v1773
    %v1817 = vrot.slane %v1816, 4
    %v1818 = vadd.f32 %v1816, %v1817
    %v1819 = vrot.slane %v1818, 2
    %v1820 = vadd.f32 %v1818, %v1819
    %v1821 = vrot.slane %v1820, 1
    %v1822 = vadd.f32 %v1820, %v1821
    %v1823 = vadd.f32 %v1776, %v1779
    %v1824 = vrot.slane %v1823, 4
    %v1825 = vadd.f32 %v1823, %v1824
    %v1826 = vrot.slane %v1825, 2
    %v1827 = vadd.f32 %v1825, %v1826
    %v1828 = vrot.slane %v1827, 1
    %v1829 = vadd.f32 %v1827, %v1828
    %v1830 = vadd.f32 %v1782, %v1785
    %v1831 = vrot.slane %v1830, 4
    %v1832 = vadd.f32 %v1830, %v1831
    %v1833 = vrot.slane %v1832, 2
    %v1834 = vadd.f32 %v1832, %v1833
    %v1835 = vrot.slane %v1834, 1
    %v1836 = vadd.f32 %v1834, %v1835
    %v1837 = vadd.f32 %v1788, %v1791
    %v1838 = vrot.slane %v1837, 4
    %v1839 = vadd.f32 %v1837, %v1838
    %v1840 = vrot.slane %v1839, 2
    %v1841 = vadd.f32 %v1839, %v1840
    %v1842 = vrot.slane %v1841, 1
    %v1843 = vadd.f32 %v1841, %v1842
    %v1844 = vadd.f32 %v1794, %v1797
    %v1845 = vrot.slane %v1844, 4
    %v1846 = vadd.f32 %v1844, %v1845
    %v1847 = vrot.slane %v1846, 2
    %v1848 = vadd.f32 %v1846, %v1847
    %v1849 = vrot.slane %v1848, 1
    %v1850 = vadd.f32 %v1848, %v1849
    %v1851 = vadd.f32 %v1800, %v1803
    %v1852 = vrot.slane %v1851, 4
    %v1853 = vadd.f32 %v1851, %v1852
    %v1854 = vrot.slane %v1853, 2
    %v1855 = vadd.f32 %v1853, %v1854
    %v1856 = vrot.slane %v1855, 1
    %v1857 = vadd.f32 %v1855, %v1856
    %v1858 = vadd.f32 %v1806, %v1809
    %v1859 = vrot.slane %v1858, 4
    %v1860 = vadd.f32 %v1858, %v1859
    %v1861 = vrot.slane %v1860, 2
    %v1862 = vadd.f32 %v1860, %v1861
    %v1863 = vrot.slane %v1862, 1
    %v1864 = vadd.f32 %v1862, %v1863
    %v1865 = vadd.f32 %v1812, %v1815
    %v1866 = vrot.slane %v1865, 4
    %v1867 = vadd.f32 %v1865, %v1866
    %v1868 = vrot.slane %v1867, 2
    %v1869 = vadd.f32 %v1867, %v1868
    %v1870 = vrot.slane %v1869, 1
    %v1871 = vadd.f32 %v1869, %v1870
    %vm1880 = vcmask 1041409
    %v1881 = vsel %vm1880, %v1829, %v1822
    %vm1882 = vcmask 1042434
    %v1883 = vsel %vm1882, %v1836, %v1881
    %vm1884 = vcmask 1043459
    %v1885 = vsel %vm1884, %v1843, %v1883
    %vm1886 = vcmask 1044484
    %v1887 = vsel %vm1886, %v1850, %v1885
    %vm1888 = vcmask 1045509
    %v1889 = vsel %vm1888, %v1857, %v1887
    %vm1890 = vcmask 1046534
    %v1891 = vsel %vm1890, %v1864, %v1889
    %vm1892 = vcmask 1047559
    %v1893 = vsel %vm1892, %v1871, %v1891
    %vm1895 = vcmask 7168
    %1896 = vst.msk [vmem:[%s2] sm:$0xff] %vm1895, %v1893
    // Predicated region
    $region18: #{l1_charbonnier_w_loss.1} parent=1 // pred_check
      _
    $region19: #{l1_charbonnier_w_loss.1} parent=1 // pred_check_branch
      %1898 = sbr.rel (0) target = $region21
    $region20: #{l1_charbonnier_w_loss.1} parent=1 // pred_region
      _
    $region21: #{l1_charbonnier_w_loss.1} parent=1 // pred_fallthru
      _
    // Predicated region
    $region22: #{l1_charbonnier_w_loss.1} parent=1 // pred_check
      _
    $region23: #{l1_charbonnier_w_loss.1} parent=1 // pred_check_branch
      %1900 = sbr.rel (0) target = $region25
    $region24: #{l1_charbonnier_w_loss.1} parent=1 // pred_region
      _
    $region25: #{l1_charbonnier_w_loss.1} parent=1 // pred_fallthru
      _
    %1901 = vsyncpa [#allocation3], 1
    %1902 = vsyncpa [#allocation5], 1

</llo_original>
